<compile_context>
chip_gen: v7x
topology: tpu7x:2x2x1
jax: 0.10.0
libtpu: 0.0.40
codegen_flags: <defaults>
</compile_context>

<pallas_src>
import jax
import jax.numpy as jnp
from jax import lax
from jax.experimental import pallas as pl
from jax.experimental.pallas import tpu as pltpu


def ranker_kernel(scal_ref, x_ref, w_ref, runscore_ref, out_ref, acc_ref):
    # scal_ref (SMEM, f32[3]) = [alpha, 1 - alpha, bias]
    k = pl.program_id(1)

    @pl.when(k == 0)
    def _init():
        acc_ref[...] = jnp.zeros_like(acc_ref)

    # Synthetic _forward: partial linear score for this H tile on the MXU.
    # (1, th) contracted with (tb, th) over the lane dim -> lane-dense (1, tb)
    # row vector, f32 accumulation, full-f32 contract precision (free: the
    # kernel is HBM-bound, MXU is nowhere near saturated).
    acc_ref[...] += lax.dot_general(
        w_ref[...], x_ref[...],
        dimension_numbers=(((1,), (1,)), ((), ())),
        preferred_element_type=jnp.float32,
        precision=jax.lax.Precision.HIGHEST,
    )

    @pl.when(k == pl.num_programs(1) - 1)
    def _finalize():
        alpha = scal_ref[0]
        one_minus_alpha = scal_ref[1]
        bias = scal_ref[2]
        scores = acc_ref[...] + bias
        # Ranker.forward runscore blend (full-vreg VPU op on lane-dense data).
        out_ref[...] = alpha * scores + one_minus_alpha * runscore_ref[...]


def _round_up(n, m):
    return ((n + m - 1) // m) * m


def _vmem_capacity_bytes():
    try:
        return int(pltpu.get_tpu_info().vmem_capacity_bytes)
    except Exception:
        return 128 << 20  # conservative default: v5e/v6e-class


def _budgets():
    """(x-tile byte budget, vmem_limit_bytes cap) by chip generation."""
    if _vmem_capacity_bytes() <= (64 << 20):   # v7x-class: 64 MiB per TC
        return 12 << 20, 48 << 20
    return 8 << 20, 96 << 20                   # v5e / v6e: 128 MiB per TC


def _largest_divisor_tile(total, cap):
    """Largest multiple of 128 that divides `total` (itself a multiple of 128)
    and is <= cap; at least 128."""
    cap = max(128, min(cap, total))
    best = 128
    t = 128
    while t <= cap:
        if total % t == 0:
            best = t
        t += 128
    return best


def _plan_tiles(B, H, itemsize, x_tile_budget):
    """Returns (b_pad, h_pad, tb, th) for byte-budgeted, lane-aligned tiles."""
    b_aligned = _round_up(B, 128)
    row_bytes = H * itemsize
    if 128 * row_bytes <= x_tile_budget:
        # Single H block per batch tile; no H padding needed (full-extent dim).
        tb_cap = min(x_tile_budget // row_bytes, b_aligned)
        tb = _largest_divisor_tile(b_aligned, tb_cap)
        return b_aligned, H, tb, H
    # H too large for even a 128-row tile: split the reduction axis too.
    h_aligned = _round_up(H, 128)
    th_cap = max(128, x_tile_budget // (128 * itemsize))
    th = _largest_divisor_tile(h_aligned, th_cap)
    return b_aligned, h_aligned, 128, th


def ranker_forward(x, w, bias, runscore_alpha, runscore, *,
                   x_tile_budget_bytes=None):
    """x: (B, H); w: (H,); bias: (1,); runscore_alpha: (1,); runscore: (B,)
    -> (B,) f32"""
    B, H = x.shape
    itemsize = jnp.dtype(x.dtype).itemsize

    x_budget, vmem_cap = _budgets()
    if x_tile_budget_bytes is not None:
        x_budget = int(x_tile_budget_bytes)

    b_pad, h_pad, tb, th = _plan_tiles(B, H, itemsize, x_budget)

    # Zero-pad to lane-aligned, tile-divisible extents (sliced off below).
    # Zero rows/cols contribute nothing to the dot; padded lanes are discarded.
    if b_pad != B or h_pad != H:
        x = jnp.pad(x, ((0, b_pad - B), (0, h_pad - H)))
    if h_pad != H:
        w = jnp.pad(w, (0, h_pad - H))
    rs = runscore.astype(jnp.float32)
    if b_pad != B:
        rs = jnp.pad(rs, (0, b_pad - B))

    # Hoisted scalar work (once, in the wrapper -> SMEM).
    alpha = jax.nn.sigmoid(runscore_alpha.astype(jnp.float32)[0])
    scal = jnp.stack([alpha, 1.0 - alpha, bias.astype(jnp.float32)[0]])

    # Lane-dense row-vector layouts (cheap metadata reshapes).
    w_row = w.reshape(1, h_pad).astype(x.dtype)
    rs_row = rs.reshape(1, b_pad)

    grid = (b_pad // tb, h_pad // th)

    cost = pl.CostEstimate(
        flops=2 * b_pad * h_pad + 3 * b_pad,
        transcendentals=0,
        bytes_accessed=itemsize * (b_pad * h_pad + h_pad) + 4 * (2 * b_pad) + 12,
    )

    # Double-buffered x tile + w tile + runscore/out blocks + accumulator,
    # with headroom; always <= the generation-specific cap by construction.
    vmem_bytes = (2 * tb * th * itemsize       # x tiles (double-buffered)
                  + 2 * 8 * th * itemsize      # w tile (sublane-padded)
                  + 4 * 8 * tb * 4             # runscore + out blocks
                  + 8 * tb * 4                 # accumulator scratch
                  + (2 << 20))                 # compiler-internal headroom
    vmem_bytes = int(min(max(vmem_bytes, 4 << 20), vmem_cap))

    out = pl.pallas_call(
        ranker_kernel,
        out_shape=jax.ShapeDtypeStruct((1, b_pad), jnp.float32),
        grid=grid,
        in_specs=[
            pl.BlockSpec(memory_space=pltpu.SMEM),           # [alpha, 1-a, bias]
            pl.BlockSpec((tb, th), lambda i, k: (i, k)),     # x tile (streamed)
            pl.BlockSpec((1, th), lambda i, k: (0, k)),      # w tile (resident in i)
            pl.BlockSpec((1, tb), lambda i, k: (0, i)),      # runscore tile
        ],
        out_specs=pl.BlockSpec((1, tb), lambda i, k: (0, i)),
        scratch_shapes=[pltpu.VMEM((1, tb), jnp.float32)],
        compiler_params=pltpu.CompilerParams(
            dimension_semantics=("parallel", "arbitrary"),
            vmem_limit_bytes=vmem_bytes,
        ),
        cost_estimate=cost,
    )(scal, x, w_row, rs_row)

    # Ranker.forward: result.reshape(result.shape[0]) when shape == (B, 1);
    # slice off the zero-padded tail.
    return out.reshape(b_pad)[:B]


def ranker_forward_ref(x, w, bias, runscore_alpha, runscore):
    scores = jnp.sum(x.astype(jnp.float32) * w[None, :].astype(jnp.float32),
                     axis=-1) + bias.astype(jnp.float32)[0]
    alpha = jax.nn.sigmoid(runscore_alpha.astype(jnp.float32)[0])
    return alpha * scores + (1.0 - alpha) * runscore.astype(jnp.float32)


if __name__ == "__main__":
    # Small deterministic shapes; B=300 exercises the zero-pad path (-> 384).
    B, H = 300, 256

    key = jax.random.PRNGKey(0)
    kx, kw, kb, kr = jax.random.split(key, 4)

    x = jax.random.normal(kx, (B, H), dtype=jnp.float32)
    w = jax.random.normal(kw, (H,), dtype=jnp.float32) * 0.1
    bias = jax.random.normal(kb, (1,), dtype=jnp.float32) * 0.1
    runscore = jax.random.normal(kr, (B,), dtype=jnp.float32)
    # Module __init__: runscore_alpha = Parameter(torch.full((1,), -1.0))
    runscore_alpha = jnp.full((1,), -1.0, dtype=jnp.float32)

    ref = ranker_forward_ref(x, w, bias, runscore_alpha, runscore)

    # 1) Default byte-budgeted tiling (single H block, one batch tile).
    out = ranker_forward(x, w, bias, runscore_alpha, runscore)
    out = jax.block_until_ready(out)
    assert out.shape == (B,)
    assert jnp.allclose(out, ref, atol=1e-4, rtol=1e-4), (out, ref)

    # 2) Tiny forced budget: exercises the batch grid AND the split-H
    #    reduction axis with the (1, TB) accumulator scratch (grid (3, 2)).
    out2 = ranker_forward(x, w, bias, runscore_alpha, runscore,
                          x_tile_budget_bytes=128 * 128 * 4)
    out2 = jax.block_until_ready(out2)
    assert out2.shape == (B,)
    assert jnp.allclose(out2, ref, atol=1e-4, rtol=1e-4), (out2, ref)

    print("KERNEL_OK")
</pallas_src>

<mosaic_0001>
module attributes {stable_mosaic.version = 11 : i64} {
  func.func @ranker_kernel(%arg0: i32, %arg1: i32, %arg2: memref<3xf32, #tpu.memory_space<smem>>, %arg3: memref<384x256xf32, #tpu.memory_space<vmem>>, %arg4: memref<1x256xf32, #tpu.memory_space<vmem>>, %arg5: memref<1x384xf32, #tpu.memory_space<vmem>>, %arg6: memref<1x384xf32, #tpu.memory_space<vmem>>, %arg7: memref<1x384xf32, #tpu.memory_space<vmem>>) attributes {dimension_semantics = [#tpu.dimension_semantics<parallel>, #tpu.dimension_semantics<arbitrary>], iteration_bounds = array<i64: 1, 1>, scalar_prefetch = 0 : i64, scratch_operands = 1 : i64, tpu.core_type = #tpu.core_type<tc>, window_params = [{transform_indices = @transform_0, window_bounds = array<i64: 3>}, {transform_indices = @transform_1, window_bounds = array<i64: 384, 256>}, {transform_indices = @transform_2, window_bounds = array<i64: 1, 256>}, {transform_indices = @transform_3, window_bounds = array<i64: 1, 384>}, {transform_indices = @transform_4, window_bounds = array<i64: 1, 384>}]} {
    %c0_i32 = arith.constant 0 : i32
    %0 = arith.cmpi eq, %arg1, %c0_i32 : i32
    %1 = arith.extui %0 : i1 to i32
    %c0_i32_0 = arith.constant 0 : i32
    %2 = arith.cmpi ne, %1, %c0_i32_0 : i32
    scf.if %2 {
      %cst_10 = arith.constant 0.000000e+00 : f32
      %12 = vector.broadcast %cst_10 : f32 to vector<1x384xf32>
      %c0_11 = arith.constant 0 : index
      %c0_12 = arith.constant 0 : index
      %13 = vector.load %arg7[%c0_11, %c0_12] : memref<1x384xf32, #tpu.memory_space<vmem>>, vector<1x384xf32>
      tpu.vector_store %arg7[%c0_11, %c0_12], %12 {strides = array<i32>} : memref<1x384xf32, #tpu.memory_space<vmem>>, vector<1x384xf32>,
    } else {
    }
    %c0 = arith.constant 0 : index
    %c0_1 = arith.constant 0 : index
    %3 = vector.load %arg7[%c0, %c0_1] : memref<1x384xf32, #tpu.memory_space<vmem>>, vector<1x384xf32>
    %c0_2 = arith.constant 0 : index
    %c0_3 = arith.constant 0 : index
    %4 = vector.load %arg4[%c0_2, %c0_3] : memref<1x256xf32, #tpu.memory_space<vmem>>, vector<1x256xf32>
    %c0_4 = arith.constant 0 : index
    %c0_5 = arith.constant 0 : index
    %5 = vector.load %arg3[%c0_4, %c0_5] : memref<384x256xf32, #tpu.memory_space<vmem>>, vector<384x256xf32>
    %cst = arith.constant dense<0.000000e+00> : vector<1x384xf32>
    %6 = tpu.matmul %4, %5, %cst {dimension_numbers = #tpu.dot_dimension_numbers<[1], [1], [0], [0], [0, 0, 1, 0], [], []>, precision = #tpu.contract_precision<fp32>} : vector<1x256xf32>, vector<384x256xf32>, vector<1x384xf32> -> vector<1x384xf32>
    %7 = arith.addf %3, %6 : vector<1x384xf32>
    %c0_6 = arith.constant 0 : index
    %c0_7 = arith.constant 0 : index
    %8 = vector.load %arg7[%c0_6, %c0_7] : memref<1x384xf32, #tpu.memory_space<vmem>>, vector<1x384xf32>
    tpu.vector_store %arg7[%c0_6, %c0_7], %7 {strides = array<i32>} : memref<1x384xf32, #tpu.memory_space<vmem>>, vector<1x384xf32>,
    %c0_i32_8 = arith.constant 0 : i32
    %9 = arith.cmpi eq, %arg1, %c0_i32_8 : i32
    %10 = arith.extui %9 : i1 to i32
    %c0_i32_9 = arith.constant 0 : i32
    %11 = arith.cmpi ne, %10, %c0_i32_9 : i32
    scf.if %11 {
      %c0_10 = arith.constant 0 : index
      %12 = memref.load %arg2[%c0_10] : memref<3xf32, #tpu.memory_space<smem>>
      %c1 = arith.constant 1 : index
      %13 = memref.load %arg2[%c1] : memref<3xf32, #tpu.memory_space<smem>>
      %c2 = arith.constant 2 : index
      %14 = memref.load %arg2[%c2] : memref<3xf32, #tpu.memory_space<smem>>
      %c0_11 = arith.constant 0 : index
      %c0_12 = arith.constant 0 : index
      %15 = vector.load %arg7[%c0_11, %c0_12] : memref<1x384xf32, #tpu.memory_space<vmem>>, vector<1x384xf32>
      %16 = vector.broadcast %14 : f32 to vector<1x384xf32>
      %17 = arith.addf %15, %16 : vector<1x384xf32>
      %18 = vector.broadcast %12 : f32 to vector<1x384xf32>
      %19 = arith.mulf %18, %17 : vector<1x384xf32>
      %c0_13 = arith.constant 0 : index
      %c0_14 = arith.constant 0 : index
      %20 = vector.load %arg5[%c0_13, %c0_14] : memref<1x384xf32, #tpu.memory_space<vmem>>, vector<1x384xf32>
      %21 = vector.broadcast %13 : f32 to vector<1x384xf32>
      %22 = arith.mulf %21, %20 : vector<1x384xf32>
      %23 = arith.addf %19, %22 : vector<1x384xf32>
      %c0_15 = arith.constant 0 : index
      %c0_16 = arith.constant 0 : index
      %24 = vector.load %arg6[%c0_15, %c0_16] : memref<1x384xf32, #tpu.memory_space<vmem>>, vector<1x384xf32>
      tpu.vector_store %arg6[%c0_15, %c0_16], %23 {strides = array<i32>} : memref<1x384xf32, #tpu.memory_space<vmem>>, vector<1x384xf32>,
    } else {
    }
    return
  }
  func.func @transform_0(%arg0: i32, %arg1: i32) -> i32 {
    %c0_i32 = arith.constant 0 : i32
    %c0_i32_0 = arith.constant 0 : i32
    return %c0_i32 : i32
  }
  func.func @transform_1(%arg0: i32, %arg1: i32) -> (i32, i32) {
    %c0_i32 = arith.constant 0 : i32
    return %arg0, %arg1 : i32, i32
  }
  func.func @transform_2(%arg0: i32, %arg1: i32) -> (i32, i32) {
    %c0_i32 = arith.constant 0 : i32
    %c0_i32_0 = arith.constant 0 : i32
    return %c0_i32, %arg1 : i32, i32
  }
  func.func @transform_3(%arg0: i32, %arg1: i32) -> (i32, i32) {
    %c0_i32 = arith.constant 0 : i32
    %c0_i32_0 = arith.constant 0 : i32
    return %c0_i32, %arg0 : i32, i32
  }
  func.func @transform_4(%arg0: i32, %arg1: i32) -> (i32, i32) {
    %c0_i32 = arith.constant 0 : i32
    %c0_i32_0 = arith.constant 0 : i32
    return %c0_i32, %arg0 : i32, i32
  }
}

</mosaic_0001>

<llo_original>
// kernel: tpu_custom_call.1
$region0: #{tpu_custom_call.1}
  #allocation0 [shape = 'u32[]', space=smem, size = 0x4, offset = 0x4, fixed_abs, tag = 'smem constant byte address 0x4 - core index']
  #allocation1 [shape = 'u32[144,128]{1,0:T(1,128)}', space=vmem, size = 0x12000, scoped, tag = 'internal scratch']
  #allocation2 [shape = 'f32[1,384]{1,0:T(1,128)}', space=vmem, size = 0x600, scoped, tag = 'scratch operand']
  %s0 = inlined_call_operand.hbm [shape: f32[3], index: 0, kind: input, shape index: {}]
  %s1 = inlined_call_operand.hbm [shape: f32[384,256], index: 1, kind: input, shape index: {}]
  %s2 = inlined_call_operand.vmem [shape: f32[1,256], index: 2, kind: input, shape index: {}]
  %s3 = inlined_call_operand.vmem [shape: f32[1,384], index: 3, kind: input, shape index: {}]
  %s4 = inlined_call_operand.hbm [shape: f32[1,384], index: 4, kind: output, shape index: {}]
  %s5 = sld [smem:[#allocation0]]
  $region42: #{tpu_custom_call.1} parent=0
    _
  %s7 = ssub.s32 1, %s5
  %s8 = scalar_select 0, %s7, %s5
  $region1: #{tpu_custom_call.1} parent=0
    #allocation3 [shape = 'u8[512]{0}', space=smem, size = 0x200, scoped, tag = 'input window, operand 0, single buffered']
    #allocation4 [shape = 's32[1]{0}', space=sflag, size = 0x4, scoped, tag = 'scoped memory for tpu_custom_call.1']
    #allocation5 [shape = 's32[1]{0}', space=sflag, size = 0x4, scoped, tag = 'scoped memory for tpu_custom_call.1']
    #allocation6 [shape = 's32[1]{0}', space=sflag, size = 0x4, scoped, tag = 'scoped memory for tpu_custom_call.1']
    #allocation7 [shape = 'u8[393216]{0}', space=vmem, size = 0x60000, scoped, tag = 'input window, operand 1, single buffered']
    #allocation8 [shape = 'u8[1536]{0}', space=vmem, size = 0x800, scoped, tag = 'output window, operand 0, single buffered']
    %9 = vsyncpa [#allocation6], 0
    %10 = vsyncpa [#allocation4], 0
    %11 = vsyncpa [#allocation5], 0
    // Predicated region
    $region2: #{tpu_custom_call.1} parent=1 // pred_check
      _
    $region3: #{tpu_custom_call.1} parent=1 // pred_check_branch
      %13 = sbr.rel (0) target = $region5
    $region4: #{tpu_custom_call.1} parent=1 // pred_region
      %s15 = ssub.s32 16, 16
      %16 = vsyncadd [#allocation6], %s15
      %19 = dma.hbm_to_smem %s0, 16, [#allocation3], [#allocation6]
    $region5: #{tpu_custom_call.1} parent=1 // pred_fallthru
      _
    // Predicated region
    $region6: #{tpu_custom_call.1} parent=1 // pred_check
      _
    $region7: #{tpu_custom_call.1} parent=1 // pred_check_branch
      %21 = sbr.rel (0) target = $region9
    $region8: #{tpu_custom_call.1} parent=1 // pred_region
      %s23 = ssub.s32 12288, 12288
      %24 = vsyncadd [#allocation4], %s23
      %s25 = sshll.u32 [#allocation7], 4
      %s26 = int_to_ptr.vmem [resolvable:$true] %s25
      %31 = dma.hbm_to_vmem [thread:$0]  %s1, 12288, %s26, [#allocation4], 256, 256, 16
    $region9: #{tpu_custom_call.1} parent=1 // pred_fallthru
      _
    // Predicated region
    $region10: #{tpu_custom_call.1} parent=1 // pred_check
      _
    $region11: #{tpu_custom_call.1} parent=1 // pred_check_branch
      %33 = sbr.rel (0) target = $region13
    $region12: #{tpu_custom_call.1} parent=1 // pred_region
      _
    $region13: #{tpu_custom_call.1} parent=1 // pred_fallthru
      _
    // Predicated region
    $region14: #{tpu_custom_call.1} parent=1 // pred_check
      _
    $region15: #{tpu_custom_call.1} parent=1 // pred_check_branch
      %35 = sbr.rel (0) target = $region17
    $region16: #{tpu_custom_call.1} parent=1 // pred_region
      _
    $region17: #{tpu_custom_call.1} parent=1 // pred_fallthru
      _
    // Predicated region
    $region18: #{tpu_custom_call.1} parent=1 // pred_check
      _
    $region19: #{tpu_custom_call.1} parent=1 // pred_check_branch
      %37 = sbr.rel (0) target = $region21
    $region20: #{tpu_custom_call.1} parent=1 // pred_region
      %38 = dma.done [#allocation6], 16
    $region21: #{tpu_custom_call.1} parent=1 // pred_fallthru
      _
    // Predicated region
    $region22: #{tpu_custom_call.1} parent=1 // pred_check
      _
    $region23: #{tpu_custom_call.1} parent=1 // pred_check_branch
      %40 = sbr.rel (0) target = $region25
    $region24: #{tpu_custom_call.1} parent=1 // pred_region
      %41 = dma.done [#allocation4], 12288
    $region25: #{tpu_custom_call.1} parent=1 // pred_fallthru
      _
    %42 = sfence
    %p43 = scmp.eq.s32.totalorder 0, 0
    // Predicated region
    $region26: #{tpu_custom_call.1} parent=1 // pred_check
      %p44 = pneg %p43
    $region27: #{tpu_custom_call.1} parent=1 // pred_check_branch
      %46 = sbr.rel (%p44) target = $region29
    $region28: #{tpu_custom_call.1} parent=1 // pred_region
      %v47 = vlaneseq
      %vm48 = vcmp.ge.s32.totalorder %v47, 0
      %vm49 = vcmp.lt.s32.totalorder %v47, 384
      %vm50 = vmand %vm48, %vm49
      %51 = vst.msk [vmem:[#allocation2] sm:$0x7] %vm50, 0.0
    $region29: #{tpu_custom_call.1} parent=1 // pred_fallthru
      _
    %v52 = vld [vmem:[#allocation2] sm:$0x7]
    %v53 = vld [vmem:[%s2] sm:$0x3]
    %v54 = vld [vmem:[#allocation7] sm:$0xff]
    %v55 = vld [vmem:[#allocation7 + $0x8] sm:$0xff]
    %v56 = vld [vmem:[#allocation7 + $0x10] sm:$0xff]
    %v57 = vld [vmem:[#allocation7 + $0x18] sm:$0xff]
    %v58 = vld [vmem:[#allocation7 + $0x20] sm:$0xff]
    %v59 = vld [vmem:[#allocation7 + $0x28] sm:$0xff]
    %v60 = vld [vmem:[#allocation7 + $0x30] sm:$0xff]
    %v61 = vld [vmem:[#allocation7 + $0x38] sm:$0xff]
    %v62 = vld [vmem:[#allocation7 + $0x40] sm:$0xff]
    %v63 = vld [vmem:[#allocation7 + $0x48] sm:$0xff]
    %v64 = vld [vmem:[#allocation7 + $0x50] sm:$0xff]
    %v65 = vld [vmem:[#allocation7 + $0x58] sm:$0xff]
    %v66 = vld [vmem:[#allocation7 + $0x60] sm:$0xff]
    %v67 = vld [vmem:[#allocation7 + $0x68] sm:$0xff]
    %v68 = vld [vmem:[#allocation7 + $0x70] sm:$0xff]
    %v69 = vld [vmem:[#allocation7 + $0x78] sm:$0xff]
    %v70 = vld [vmem:[#allocation7 + $0x80] sm:$0xff]
    %v71 = vld [vmem:[#allocation7 + $0x88] sm:$0xff]
    %v72 = vld [vmem:[#allocation7 + $0x90] sm:$0xff]
    %v73 = vld [vmem:[#allocation7 + $0x98] sm:$0xff]
    %v74 = vld [vmem:[#allocation7 + $0xa0] sm:$0xff]
    %v75 = vld [vmem:[#allocation7 + $0xa8] sm:$0xff]
    %v76 = vld [vmem:[#allocation7 + $0xb0] sm:$0xff]
    %v77 = vld [vmem:[#allocation7 + $0xb8] sm:$0xff]
    %v78 = vld [vmem:[#allocation7 + $0xc0] sm:$0xff]
    %v79 = vld [vmem:[#allocation7 + $0xc8] sm:$0xff]
    %v80 = vld [vmem:[#allocation7 + $0xd0] sm:$0xff]
    %v81 = vld [vmem:[#allocation7 + $0xd8] sm:$0xff]
    %v82 = vld [vmem:[#allocation7 + $0xe0] sm:$0xff]
    %v83 = vld [vmem:[#allocation7 + $0xe8] sm:$0xff]
    %v84 = vld [vmem:[#allocation7 + $0xf0] sm:$0xff]
    %v85 = vld [vmem:[#allocation7 + $0xf8] sm:$0xff]
    %v86 = vld [vmem:[#allocation7 + $0x100] sm:$0xff]
    %v87 = vld [vmem:[#allocation7 + $0x108] sm:$0xff]
    %v88 = vld [vmem:[#allocation7 + $0x110] sm:$0xff]
    %v89 = vld [vmem:[#allocation7 + $0x118] sm:$0xff]
    %v90 = vld [vmem:[#allocation7 + $0x120] sm:$0xff]
    %v91 = vld [vmem:[#allocation7 + $0x128] sm:$0xff]
    %v92 = vld [vmem:[#allocation7 + $0x130] sm:$0xff]
    %v93 = vld [vmem:[#allocation7 + $0x138] sm:$0xff]
    %v94 = vld [vmem:[#allocation7 + $0x140] sm:$0xff]
    %v95 = vld [vmem:[#allocation7 + $0x148] sm:$0xff]
    %v96 = vld [vmem:[#allocation7 + $0x150] sm:$0xff]
    %v97 = vld [vmem:[#allocation7 + $0x158] sm:$0xff]
    %v98 = vld [vmem:[#allocation7 + $0x160] sm:$0xff]
    %v99 = vld [vmem:[#allocation7 + $0x168] sm:$0xff]
    %v100 = vld [vmem:[#allocation7 + $0x170] sm:$0xff]
    %v101 = vld [vmem:[#allocation7 + $0x178] sm:$0xff]
    %v102 = vld [vmem:[#allocation7 + $0x180] sm:$0xff]
    %v103 = vld [vmem:[#allocation7 + $0x188] sm:$0xff]
    %v104 = vld [vmem:[#allocation7 + $0x190] sm:$0xff]
    %v105 = vld [vmem:[#allocation7 + $0x198] sm:$0xff]
    %v106 = vld [vmem:[#allocation7 + $0x1a0] sm:$0xff]
    %v107 = vld [vmem:[#allocation7 + $0x1a8] sm:$0xff]
    %v108 = vld [vmem:[#allocation7 + $0x1b0] sm:$0xff]
    %v109 = vld [vmem:[#allocation7 + $0x1b8] sm:$0xff]
    %v110 = vld [vmem:[#allocation7 + $0x1c0] sm:$0xff]
    %v111 = vld [vmem:[#allocation7 + $0x1c8] sm:$0xff]
    %v112 = vld [vmem:[#allocation7 + $0x1d0] sm:$0xff]
    %v113 = vld [vmem:[#allocation7 + $0x1d8] sm:$0xff]
    %v114 = vld [vmem:[#allocation7 + $0x1e0] sm:$0xff]
    %v115 = vld [vmem:[#allocation7 + $0x1e8] sm:$0xff]
    %v116 = vld [vmem:[#allocation7 + $0x1f0] sm:$0xff]
    %v117 = vld [vmem:[#allocation7 + $0x1f8] sm:$0xff]
    %v118 = vld [vmem:[#allocation7 + $0x200] sm:$0xff]
    %v119 = vld [vmem:[#allocation7 + $0x208] sm:$0xff]
    %v120 = vld [vmem:[#allocation7 + $0x210] sm:$0xff]
    %v121 = vld [vmem:[#allocation7 + $0x218] sm:$0xff]
    %v122 = vld [vmem:[#allocation7 + $0x220] sm:$0xff]
    %v123 = vld [vmem:[#allocation7 + $0x228] sm:$0xff]
    %v124 = vld [vmem:[#allocation7 + $0x230] sm:$0xff]
    %v125 = vld [vmem:[#allocation7 + $0x238] sm:$0xff]
    %v126 = vld [vmem:[#allocation7 + $0x240] sm:$0xff]
    %v127 = vld [vmem:[#allocation7 + $0x248] sm:$0xff]
    %v128 = vld [vmem:[#allocation7 + $0x250] sm:$0xff]
    %v129 = vld [vmem:[#allocation7 + $0x258] sm:$0xff]
    %v130 = vld [vmem:[#allocation7 + $0x260] sm:$0xff]
    %v131 = vld [vmem:[#allocation7 + $0x268] sm:$0xff]
    %v132 = vld [vmem:[#allocation7 + $0x270] sm:$0xff]
    %v133 = vld [vmem:[#allocation7 + $0x278] sm:$0xff]
    %v134 = vld [vmem:[#allocation7 + $0x280] sm:$0xff]
    %v135 = vld [vmem:[#allocation7 + $0x288] sm:$0xff]
    %v136 = vld [vmem:[#allocation7 + $0x290] sm:$0xff]
    %v137 = vld [vmem:[#allocation7 + $0x298] sm:$0xff]
    %v138 = vld [vmem:[#allocation7 + $0x2a0] sm:$0xff]
    %v139 = vld [vmem:[#allocation7 + $0x2a8] sm:$0xff]
    %v140 = vld [vmem:[#allocation7 + $0x2b0] sm:$0xff]
    %v141 = vld [vmem:[#allocation7 + $0x2b8] sm:$0xff]
    %v142 = vld [vmem:[#allocation7 + $0x2c0] sm:$0xff]
    %v143 = vld [vmem:[#allocation7 + $0x2c8] sm:$0xff]
    %v144 = vld [vmem:[#allocation7 + $0x2d0] sm:$0xff]
    %v145 = vld [vmem:[#allocation7 + $0x2d8] sm:$0xff]
    %v146 = vld [vmem:[#allocation7 + $0x2e0] sm:$0xff]
    %v147 = vld [vmem:[#allocation7 + $0x2e8] sm:$0xff]
    %v148 = vld [vmem:[#allocation7 + $0x2f0] sm:$0xff]
    %v149 = vld [vmem:[#allocation7 + $0x2f8] sm:$0xff]
    %v151 = vlaneseq
    %v152 = vshrl.u32 %v151, 7
    %v153 = vsub.s32 0, %v152
    %v154 = vrot.slane %v53, %v153
    %v155 = vlaneseq
    %v156 = vshrl.u32 %v155, 7
    %v157 = vsub.s32 1, %v156
    %v158 = vrot.slane %v53, %v157
    %v161 = vand.u32 %v55, 4294901760
    %162 = vmatprep.subr.mxu0 %v161
    %v163 = vand.u32 %v54, 4294901760
    %164 = vmatpush1.xpose.msra.mxu0 %v163
    %v165 = vand.u32 %v57, 4294901760
    %166 = vmatprep.subr.mxu0 %v165
    %v167 = vand.u32 %v56, 4294901760
    %168 = vmatpush1.xpose.msra.mxu0 %v167
    %v169 = vand.u32 %v59, 4294901760
    %170 = vmatprep.subr.mxu0 %v169
    %v171 = vand.u32 %v58, 4294901760
    %172 = vmatpush1.xpose.msra.mxu0 %v171
    %v173 = vand.u32 %v61, 4294901760
    %174 = vmatprep.subr.mxu0 %v173
    %v175 = vand.u32 %v60, 4294901760
    %176 = vmatpush1.xpose.msra.mxu0 %v175
    %v177 = vand.u32 %v63, 4294901760
    %178 = vmatprep.subr.mxu0 %v177
    %v179 = vand.u32 %v62, 4294901760
    %180 = vmatpush1.xpose.msra.mxu0 %v179
    %v181 = vand.u32 %v65, 4294901760
    %182 = vmatprep.subr.mxu0 %v181
    %v183 = vand.u32 %v64, 4294901760
    %184 = vmatpush1.xpose.msra.mxu0 %v183
    %v185 = vand.u32 %v67, 4294901760
    %186 = vmatprep.subr.mxu0 %v185
    %v187 = vand.u32 %v66, 4294901760
    %188 = vmatpush1.xpose.msra.mxu0 %v187
    %v189 = vand.u32 %v69, 4294901760
    %190 = vmatprep.subr.mxu0 %v189
    %v191 = vand.u32 %v68, 4294901760
    %192 = vmatpush1.xpose.msra.mxu0 %v191
    %v193 = vand.u32 %v71, 4294901760
    %194 = vmatprep.subr.mxu0 %v193
    %v195 = vand.u32 %v70, 4294901760
    %196 = vmatpush1.xpose.msra.mxu0 %v195
    %v197 = vand.u32 %v73, 4294901760
    %198 = vmatprep.subr.mxu0 %v197
    %v199 = vand.u32 %v72, 4294901760
    %200 = vmatpush1.xpose.msra.mxu0 %v199
    %v201 = vand.u32 %v75, 4294901760
    %202 = vmatprep.subr.mxu0 %v201
    %v203 = vand.u32 %v74, 4294901760
    %204 = vmatpush1.xpose.msra.mxu0 %v203
    %v205 = vand.u32 %v77, 4294901760
    %206 = vmatprep.subr.mxu0 %v205
    %v207 = vand.u32 %v76, 4294901760
    %208 = vmatpush1.xpose.msra.mxu0 %v207
    %v209 = vand.u32 %v79, 4294901760
    %210 = vmatprep.subr.mxu0 %v209
    %v211 = vand.u32 %v78, 4294901760
    %212 = vmatpush1.xpose.msra.mxu0 %v211
    %v213 = vand.u32 %v81, 4294901760
    %214 = vmatprep.subr.mxu0 %v213
    %v215 = vand.u32 %v80, 4294901760
    %216 = vmatpush1.xpose.msra.mxu0 %v215
    %v217 = vand.u32 %v83, 4294901760
    %218 = vmatprep.subr.mxu0 %v217
    %v219 = vand.u32 %v82, 4294901760
    %220 = vmatpush1.xpose.msra.mxu0 %v219
    %v221 = vand.u32 %v85, 4294901760
    %222 = vmatprep.subr.mxu0 %v221
    %v223 = vand.u32 %v84, 4294901760
    %224 = vmatpush1.xpose.msra.mxu0 %v223
    %v225 = vand.u32 %v87, 4294901760
    %226 = vmatprep.subr.mxu0 %v225
    %v227 = vand.u32 %v86, 4294901760
    %228 = vmatpush1.xpose.msra.mxu0 %v227
    %v229 = vand.u32 %v89, 4294901760
    %230 = vmatprep.subr.mxu0 %v229
    %v231 = vand.u32 %v88, 4294901760
    %232 = vmatpush1.xpose.msra.mxu0 %v231
    %v233 = vand.u32 %v91, 4294901760
    %234 = vmatprep.subr.mxu0 %v233
    %v235 = vand.u32 %v90, 4294901760
    %236 = vmatpush1.xpose.msra.mxu0 %v235
    %v237 = vand.u32 %v93, 4294901760
    %238 = vmatprep.subr.mxu0 %v237
    %v239 = vand.u32 %v92, 4294901760
    %240 = vmatpush1.xpose.msra.mxu0 %v239
    %v241 = vand.u32 %v95, 4294901760
    %242 = vmatprep.subr.mxu0 %v241
    %v243 = vand.u32 %v94, 4294901760
    %244 = vmatpush1.xpose.msra.mxu0 %v243
    %v245 = vand.u32 %v97, 4294901760
    %246 = vmatprep.subr.mxu0 %v245
    %v247 = vand.u32 %v96, 4294901760
    %248 = vmatpush1.xpose.msra.mxu0 %v247
    %v249 = vand.u32 %v99, 4294901760
    %250 = vmatprep.subr.mxu0 %v249
    %v251 = vand.u32 %v98, 4294901760
    %252 = vmatpush1.xpose.msra.mxu0 %v251
    %v253 = vand.u32 %v101, 4294901760
    %254 = vmatprep.subr.mxu0 %v253
    %v255 = vand.u32 %v100, 4294901760
    %256 = vmatpush1.xpose.msra.mxu0 %v255
    %v257 = vand.u32 %v103, 4294901760
    %258 = vmatprep.subr.mxu0 %v257
    %v259 = vand.u32 %v102, 4294901760
    %260 = vmatpush1.xpose.msra.mxu0 %v259
    %v261 = vand.u32 %v105, 4294901760
    %262 = vmatprep.subr.mxu0 %v261
    %v263 = vand.u32 %v104, 4294901760
    %264 = vmatpush1.xpose.msra.mxu0 %v263
    %v265 = vand.u32 %v107, 4294901760
    %266 = vmatprep.subr.mxu0 %v265
    %v267 = vand.u32 %v106, 4294901760
    %268 = vmatpush1.xpose.msra.mxu0 %v267
    %v269 = vand.u32 %v109, 4294901760
    %270 = vmatprep.subr.mxu0 %v269
    %v271 = vand.u32 %v108, 4294901760
    %272 = vmatpush1.xpose.msra.mxu0 %v271
    %v273 = vand.u32 %v111, 4294901760
    %274 = vmatprep.subr.mxu0 %v273
    %v275 = vand.u32 %v110, 4294901760
    %276 = vmatpush1.xpose.msra.mxu0 %v275
    %v277 = vand.u32 %v113, 4294901760
    %278 = vmatprep.subr.mxu0 %v277
    %v279 = vand.u32 %v112, 4294901760
    %280 = vmatpush1.xpose.msra.mxu0 %v279
    %v281 = vand.u32 %v115, 4294901760
    %282 = vmatprep.subr.mxu0 %v281
    %v283 = vand.u32 %v114, 4294901760
    %284 = vmatpush1.xpose.msra.mxu0 %v283
    %v285 = vand.u32 %v117, 4294901760
    %286 = vmatprep.subr.mxu0 %v285
    %v287 = vand.u32 %v116, 4294901760
    %288 = vmatpush1.xpose.msra.mxu0 %v287
    %v289 = vand.u32 %v158, 4294901760
    %v290 = vsub.f32 %v158, %v289
    %v291 = vand.u32 %v290, 4294901760
    %v292 = vsub.f32 %v290, %v291
    %v293 = vand.u32 %v292, 4294901760
    %294 = vmatprep.mubr.f32.mxu0 %v293
    %v295 = vand.u32 %v154, 4294901760
    %v296 = vsub.f32 %v154, %v295
    %v297 = vand.u32 %v296, 4294901760
    %v298 = vsub.f32 %v296, %v297
    %v299 = vand.u32 %v298, 4294901760
    %300 = vmatmul.mubr.f32.gmra.mrb[0].mxu0 %v299
    %v301 = vpop.f32.mrb[0].mxu0
    %v302 = vadd.f32 0.0, %v301
    %v303 = vpop.f32.mrb[0].mxu0
    %v304 = vadd.f32 0.0, %v303
    %305 = vdwg.mxu0
    %v306 = vand.u32 %v55, 4294901760
    %v307 = vsub.f32 %v55, %v306
    %v308 = vand.u32 %v307, 4294901760
    %v309 = vsub.f32 %v307, %v308
    %v310 = vand.u32 %v309, 4294901760
    %311 = vmatprep.subr.mxu0 %v310
    %v312 = vand.u32 %v54, 4294901760
    %v313 = vsub.f32 %v54, %v312
    %v314 = vand.u32 %v313, 4294901760
    %v315 = vsub.f32 %v313, %v314
    %v316 = vand.u32 %v315, 4294901760
    %317 = vmatpush1.xpose.msra.mxu0 %v316
    %v318 = vand.u32 %v57, 4294901760
    %v319 = vsub.f32 %v57, %v318
    %v320 = vand.u32 %v319, 4294901760
    %v321 = vsub.f32 %v319, %v320
    %v322 = vand.u32 %v321, 4294901760
    %323 = vmatprep.subr.mxu0 %v322
    %v324 = vand.u32 %v56, 4294901760
    %v325 = vsub.f32 %v56, %v324
    %v326 = vand.u32 %v325, 4294901760
    %v327 = vsub.f32 %v325, %v326
    %v328 = vand.u32 %v327, 4294901760
    %329 = vmatpush1.xpose.msra.mxu0 %v328
    %v330 = vand.u32 %v59, 4294901760
    %v331 = vsub.f32 %v59, %v330
    %v332 = vand.u32 %v331, 4294901760
    %v333 = vsub.f32 %v331, %v332
    %v334 = vand.u32 %v333, 4294901760
    %335 = vmatprep.subr.mxu0 %v334
    %v336 = vand.u32 %v58, 4294901760
    %v337 = vsub.f32 %v58, %v336
    %v338 = vand.u32 %v337, 4294901760
    %v339 = vsub.f32 %v337, %v338
    %v340 = vand.u32 %v339, 4294901760
    %341 = vmatpush1.xpose.msra.mxu0 %v340
    %v342 = vand.u32 %v61, 4294901760
    %v343 = vsub.f32 %v61, %v342
    %v344 = vand.u32 %v343, 4294901760
    %v345 = vsub.f32 %v343, %v344
    %v346 = vand.u32 %v345, 4294901760
    %347 = vmatprep.subr.mxu0 %v346
    %v348 = vand.u32 %v60, 4294901760
    %v349 = vsub.f32 %v60, %v348
    %v350 = vand.u32 %v349, 4294901760
    %v351 = vsub.f32 %v349, %v350
    %v352 = vand.u32 %v351, 4294901760
    %353 = vmatpush1.xpose.msra.mxu0 %v352
    %v354 = vand.u32 %v63, 4294901760
    %v355 = vsub.f32 %v63, %v354
    %v356 = vand.u32 %v355, 4294901760
    %v357 = vsub.f32 %v355, %v356
    %v358 = vand.u32 %v357, 4294901760
    %359 = vmatprep.subr.mxu0 %v358
    %v360 = vand.u32 %v62, 4294901760
    %v361 = vsub.f32 %v62, %v360
    %v362 = vand.u32 %v361, 4294901760
    %v363 = vsub.f32 %v361, %v362
    %v364 = vand.u32 %v363, 4294901760
    %365 = vmatpush1.xpose.msra.mxu0 %v364
    %v366 = vand.u32 %v65, 4294901760
    %v367 = vsub.f32 %v65, %v366
    %v368 = vand.u32 %v367, 4294901760
    %v369 = vsub.f32 %v367, %v368
    %v370 = vand.u32 %v369, 4294901760
    %371 = vmatprep.subr.mxu0 %v370
    %v372 = vand.u32 %v64, 4294901760
    %v373 = vsub.f32 %v64, %v372
    %v374 = vand.u32 %v373, 4294901760
    %v375 = vsub.f32 %v373, %v374
    %v376 = vand.u32 %v375, 4294901760
    %377 = vmatpush1.xpose.msra.mxu0 %v376
    %v378 = vand.u32 %v67, 4294901760
    %v379 = vsub.f32 %v67, %v378
    %v380 = vand.u32 %v379, 4294901760
    %v381 = vsub.f32 %v379, %v380
    %v382 = vand.u32 %v381, 4294901760
    %383 = vmatprep.subr.mxu0 %v382
    %v384 = vand.u32 %v66, 4294901760
    %v385 = vsub.f32 %v66, %v384
    %v386 = vand.u32 %v385, 4294901760
    %v387 = vsub.f32 %v385, %v386
    %v388 = vand.u32 %v387, 4294901760
    %389 = vmatpush1.xpose.msra.mxu0 %v388
    %v390 = vand.u32 %v69, 4294901760
    %v391 = vsub.f32 %v69, %v390
    %v392 = vand.u32 %v391, 4294901760
    %v393 = vsub.f32 %v391, %v392
    %v394 = vand.u32 %v393, 4294901760
    %395 = vmatprep.subr.mxu0 %v394
    %v396 = vand.u32 %v68, 4294901760
    %v397 = vsub.f32 %v68, %v396
    %v398 = vand.u32 %v397, 4294901760
    %v399 = vsub.f32 %v397, %v398
    %v400 = vand.u32 %v399, 4294901760
    %401 = vmatpush1.xpose.msra.mxu0 %v400
    %v402 = vand.u32 %v71, 4294901760
    %v403 = vsub.f32 %v71, %v402
    %v404 = vand.u32 %v403, 4294901760
    %v405 = vsub.f32 %v403, %v404
    %v406 = vand.u32 %v405, 4294901760
    %407 = vmatprep.subr.mxu0 %v406
    %v408 = vand.u32 %v70, 4294901760
    %v409 = vsub.f32 %v70, %v408
    %v410 = vand.u32 %v409, 4294901760
    %v411 = vsub.f32 %v409, %v410
    %v412 = vand.u32 %v411, 4294901760
    %413 = vmatpush1.xpose.msra.mxu0 %v412
    %v414 = vand.u32 %v73, 4294901760
    %v415 = vsub.f32 %v73, %v414
    %v416 = vand.u32 %v415, 4294901760
    %v417 = vsub.f32 %v415, %v416
    %v418 = vand.u32 %v417, 4294901760
    %419 = vmatprep.subr.mxu0 %v418
    %v420 = vand.u32 %v72, 4294901760
    %v421 = vsub.f32 %v72, %v420
    %v422 = vand.u32 %v421, 4294901760
    %v423 = vsub.f32 %v421, %v422
    %v424 = vand.u32 %v423, 4294901760
    %425 = vmatpush1.xpose.msra.mxu0 %v424
    %v426 = vand.u32 %v75, 4294901760
    %v427 = vsub.f32 %v75, %v426
    %v428 = vand.u32 %v427, 4294901760
    %v429 = vsub.f32 %v427, %v428
    %v430 = vand.u32 %v429, 4294901760
    %431 = vmatprep.subr.mxu0 %v430
    %v432 = vand.u32 %v74, 4294901760
    %v433 = vsub.f32 %v74, %v432
    %v434 = vand.u32 %v433, 4294901760
    %v435 = vsub.f32 %v433, %v434
    %v436 = vand.u32 %v435, 4294901760
    %437 = vmatpush1.xpose.msra.mxu0 %v436
    %v438 = vand.u32 %v77, 4294901760
    %v439 = vsub.f32 %v77, %v438
    %v440 = vand.u32 %v439, 4294901760
    %v441 = vsub.f32 %v439, %v440
    %v442 = vand.u32 %v441, 4294901760
    %443 = vmatprep.subr.mxu0 %v442
    %v444 = vand.u32 %v76, 4294901760
    %v445 = vsub.f32 %v76, %v444
    %v446 = vand.u32 %v445, 4294901760
    %v447 = vsub.f32 %v445, %v446
    %v448 = vand.u32 %v447, 4294901760
    %449 = vmatpush1.xpose.msra.mxu0 %v448
    %v450 = vand.u32 %v79, 4294901760
    %v451 = vsub.f32 %v79, %v450
    %v452 = vand.u32 %v451, 4294901760
    %v453 = vsub.f32 %v451, %v452
    %v454 = vand.u32 %v453, 4294901760
    %455 = vmatprep.subr.mxu0 %v454
    %v456 = vand.u32 %v78, 4294901760
    %v457 = vsub.f32 %v78, %v456
    %v458 = vand.u32 %v457, 4294901760
    %v459 = vsub.f32 %v457, %v458
    %v460 = vand.u32 %v459, 4294901760
    %461 = vmatpush1.xpose.msra.mxu0 %v460
    %v462 = vand.u32 %v81, 4294901760
    %v463 = vsub.f32 %v81, %v462
    %v464 = vand.u32 %v463, 4294901760
    %v465 = vsub.f32 %v463, %v464
    %v466 = vand.u32 %v465, 4294901760
    %467 = vmatprep.subr.mxu0 %v466
    %v468 = vand.u32 %v80, 4294901760
    %v469 = vsub.f32 %v80, %v468
    %v470 = vand.u32 %v469, 4294901760
    %v471 = vsub.f32 %v469, %v470
    %v472 = vand.u32 %v471, 4294901760
    %473 = vmatpush1.xpose.msra.mxu0 %v472
    %v474 = vand.u32 %v83, 4294901760
    %v475 = vsub.f32 %v83, %v474
    %v476 = vand.u32 %v475, 4294901760
    %v477 = vsub.f32 %v475, %v476
    %v478 = vand.u32 %v477, 4294901760
    %479 = vmatprep.subr.mxu0 %v478
    %v480 = vand.u32 %v82, 4294901760
    %v481 = vsub.f32 %v82, %v480
    %v482 = vand.u32 %v481, 4294901760
    %v483 = vsub.f32 %v481, %v482
    %v484 = vand.u32 %v483, 4294901760
    %485 = vmatpush1.xpose.msra.mxu0 %v484
    %v486 = vand.u32 %v85, 4294901760
    %v487 = vsub.f32 %v85, %v486
    %v488 = vand.u32 %v487, 4294901760
    %v489 = vsub.f32 %v487, %v488
    %v490 = vand.u32 %v489, 4294901760
    %491 = vmatprep.subr.mxu0 %v490
    %v492 = vand.u32 %v84, 4294901760
    %v493 = vsub.f32 %v84, %v492
    %v494 = vand.u32 %v493, 4294901760
    %v495 = vsub.f32 %v493, %v494
    %v496 = vand.u32 %v495, 4294901760
    %497 = vmatpush1.xpose.msra.mxu0 %v496
    %v498 = vand.u32 %v87, 4294901760
    %v499 = vsub.f32 %v87, %v498
    %v500 = vand.u32 %v499, 4294901760
    %v501 = vsub.f32 %v499, %v500
    %v502 = vand.u32 %v501, 4294901760
    %503 = vmatprep.subr.mxu0 %v502
    %v504 = vand.u32 %v86, 4294901760
    %v505 = vsub.f32 %v86, %v504
    %v506 = vand.u32 %v505, 4294901760
    %v507 = vsub.f32 %v505, %v506
    %v508 = vand.u32 %v507, 4294901760
    %509 = vmatpush1.xpose.msra.mxu0 %v508
    %v510 = vand.u32 %v89, 4294901760
    %v511 = vsub.f32 %v89, %v510
    %v512 = vand.u32 %v511, 4294901760
    %v513 = vsub.f32 %v511, %v512
    %v514 = vand.u32 %v513, 4294901760
    %515 = vmatprep.subr.mxu0 %v514
    %v516 = vand.u32 %v88, 4294901760
    %v517 = vsub.f32 %v88, %v516
    %v518 = vand.u32 %v517, 4294901760
    %v519 = vsub.f32 %v517, %v518
    %v520 = vand.u32 %v519, 4294901760
    %521 = vmatpush1.xpose.msra.mxu0 %v520
    %v522 = vand.u32 %v91, 4294901760
    %v523 = vsub.f32 %v91, %v522
    %v524 = vand.u32 %v523, 4294901760
    %v525 = vsub.f32 %v523, %v524
    %v526 = vand.u32 %v525, 4294901760
    %527 = vmatprep.subr.mxu0 %v526
    %v528 = vand.u32 %v90, 4294901760
    %v529 = vsub.f32 %v90, %v528
    %v530 = vand.u32 %v529, 4294901760
    %v531 = vsub.f32 %v529, %v530
    %v532 = vand.u32 %v531, 4294901760
    %533 = vmatpush1.xpose.msra.mxu0 %v532
    %v534 = vand.u32 %v93, 4294901760
    %v535 = vsub.f32 %v93, %v534
    %v536 = vand.u32 %v535, 4294901760
    %v537 = vsub.f32 %v535, %v536
    %v538 = vand.u32 %v537, 4294901760
    %539 = vmatprep.subr.mxu0 %v538
    %v540 = vand.u32 %v92, 4294901760
    %v541 = vsub.f32 %v92, %v540
    %v542 = vand.u32 %v541, 4294901760
    %v543 = vsub.f32 %v541, %v542
    %v544 = vand.u32 %v543, 4294901760
    %545 = vmatpush1.xpose.msra.mxu0 %v544
    %v546 = vand.u32 %v95, 4294901760
    %v547 = vsub.f32 %v95, %v546
    %v548 = vand.u32 %v547, 4294901760
    %v549 = vsub.f32 %v547, %v548
    %v550 = vand.u32 %v549, 4294901760
    %551 = vmatprep.subr.mxu0 %v550
    %v552 = vand.u32 %v94, 4294901760
    %v553 = vsub.f32 %v94, %v552
    %v554 = vand.u32 %v553, 4294901760
    %v555 = vsub.f32 %v553, %v554
    %v556 = vand.u32 %v555, 4294901760
    %557 = vmatpush1.xpose.msra.mxu0 %v556
    %v558 = vand.u32 %v97, 4294901760
    %v559 = vsub.f32 %v97, %v558
    %v560 = vand.u32 %v559, 4294901760
    %v561 = vsub.f32 %v559, %v560
    %v562 = vand.u32 %v561, 4294901760
    %563 = vmatprep.subr.mxu0 %v562
    %v564 = vand.u32 %v96, 4294901760
    %v565 = vsub.f32 %v96, %v564
    %v566 = vand.u32 %v565, 4294901760
    %v567 = vsub.f32 %v565, %v566
    %v568 = vand.u32 %v567, 4294901760
    %569 = vmatpush1.xpose.msra.mxu0 %v568
    %v570 = vand.u32 %v99, 4294901760
    %v571 = vsub.f32 %v99, %v570
    %v572 = vand.u32 %v571, 4294901760
    %v573 = vsub.f32 %v571, %v572
    %v574 = vand.u32 %v573, 4294901760
    %575 = vmatprep.subr.mxu0 %v574
    %v576 = vand.u32 %v98, 4294901760
    %v577 = vsub.f32 %v98, %v576
    %v578 = vand.u32 %v577, 4294901760
    %v579 = vsub.f32 %v577, %v578
    %v580 = vand.u32 %v579, 4294901760
    %581 = vmatpush1.xpose.msra.mxu0 %v580
    %v582 = vand.u32 %v101, 4294901760
    %v583 = vsub.f32 %v101, %v582
    %v584 = vand.u32 %v583, 4294901760
    %v585 = vsub.f32 %v583, %v584
    %v586 = vand.u32 %v585, 4294901760
    %587 = vmatprep.subr.mxu0 %v586
    %v588 = vand.u32 %v100, 4294901760
    %v589 = vsub.f32 %v100, %v588
    %v590 = vand.u32 %v589, 4294901760
    %v591 = vsub.f32 %v589, %v590
    %v592 = vand.u32 %v591, 4294901760
    %593 = vmatpush1.xpose.msra.mxu0 %v592
    %v594 = vand.u32 %v103, 4294901760
    %v595 = vsub.f32 %v103, %v594
    %v596 = vand.u32 %v595, 4294901760
    %v597 = vsub.f32 %v595, %v596
    %v598 = vand.u32 %v597, 4294901760
    %599 = vmatprep.subr.mxu0 %v598
    %v600 = vand.u32 %v102, 4294901760
    %v601 = vsub.f32 %v102, %v600
    %v602 = vand.u32 %v601, 4294901760
    %v603 = vsub.f32 %v601, %v602
    %v604 = vand.u32 %v603, 4294901760
    %605 = vmatpush1.xpose.msra.mxu0 %v604
    %v606 = vand.u32 %v105, 4294901760
    %v607 = vsub.f32 %v105, %v606
    %v608 = vand.u32 %v607, 4294901760
    %v609 = vsub.f32 %v607, %v608
    %v610 = vand.u32 %v609, 4294901760
    %611 = vmatprep.subr.mxu0 %v610
    %v612 = vand.u32 %v104, 4294901760
    %v613 = vsub.f32 %v104, %v612
    %v614 = vand.u32 %v613, 4294901760
    %v615 = vsub.f32 %v613, %v614
    %v616 = vand.u32 %v615, 4294901760
    %617 = vmatpush1.xpose.msra.mxu0 %v616
    %v618 = vand.u32 %v107, 4294901760
    %v619 = vsub.f32 %v107, %v618
    %v620 = vand.u32 %v619, 4294901760
    %v621 = vsub.f32 %v619, %v620
    %v622 = vand.u32 %v621, 4294901760
    %623 = vmatprep.subr.mxu0 %v622
    %v624 = vand.u32 %v106, 4294901760
    %v625 = vsub.f32 %v106, %v624
    %v626 = vand.u32 %v625, 4294901760
    %v627 = vsub.f32 %v625, %v626
    %v628 = vand.u32 %v627, 4294901760
    %629 = vmatpush1.xpose.msra.mxu0 %v628
    %v630 = vand.u32 %v109, 4294901760
    %v631 = vsub.f32 %v109, %v630
    %v632 = vand.u32 %v631, 4294901760
    %v633 = vsub.f32 %v631, %v632
    %v634 = vand.u32 %v633, 4294901760
    %635 = vmatprep.subr.mxu0 %v634
    %v636 = vand.u32 %v108, 4294901760
    %v637 = vsub.f32 %v108, %v636
    %v638 = vand.u32 %v637, 4294901760
    %v639 = vsub.f32 %v637, %v638
    %v640 = vand.u32 %v639, 4294901760
    %641 = vmatpush1.xpose.msra.mxu0 %v640
    %v642 = vand.u32 %v111, 4294901760
    %v643 = vsub.f32 %v111, %v642
    %v644 = vand.u32 %v643, 4294901760
    %v645 = vsub.f32 %v643, %v644
    %v646 = vand.u32 %v645, 4294901760
    %647 = vmatprep.subr.mxu0 %v646
    %v648 = vand.u32 %v110, 4294901760
    %v649 = vsub.f32 %v110, %v648
    %v650 = vand.u32 %v649, 4294901760
    %v651 = vsub.f32 %v649, %v650
    %v652 = vand.u32 %v651, 4294901760
    %653 = vmatpush1.xpose.msra.mxu0 %v652
    %v654 = vand.u32 %v113, 4294901760
    %v655 = vsub.f32 %v113, %v654
    %v656 = vand.u32 %v655, 4294901760
    %v657 = vsub.f32 %v655, %v656
    %v658 = vand.u32 %v657, 4294901760
    %659 = vmatprep.subr.mxu0 %v658
    %v660 = vand.u32 %v112, 4294901760
    %v661 = vsub.f32 %v112, %v660
    %v662 = vand.u32 %v661, 4294901760
    %v663 = vsub.f32 %v661, %v662
    %v664 = vand.u32 %v663, 4294901760
    %665 = vmatpush1.xpose.msra.mxu0 %v664
    %v666 = vand.u32 %v115, 4294901760
    %v667 = vsub.f32 %v115, %v666
    %v668 = vand.u32 %v667, 4294901760
    %v669 = vsub.f32 %v667, %v668
    %v670 = vand.u32 %v669, 4294901760
    %671 = vmatprep.subr.mxu0 %v670
    %v672 = vand.u32 %v114, 4294901760
    %v673 = vsub.f32 %v114, %v672
    %v674 = vand.u32 %v673, 4294901760
    %v675 = vsub.f32 %v673, %v674
    %v676 = vand.u32 %v675, 4294901760
    %677 = vmatpush1.xpose.msra.mxu0 %v676
    %v678 = vand.u32 %v117, 4294901760
    %v679 = vsub.f32 %v117, %v678
    %v680 = vand.u32 %v679, 4294901760
    %v681 = vsub.f32 %v679, %v680
    %v682 = vand.u32 %v681, 4294901760
    %683 = vmatprep.subr.mxu0 %v682
    %v684 = vand.u32 %v116, 4294901760
    %v685 = vsub.f32 %v116, %v684
    %v686 = vand.u32 %v685, 4294901760
    %v687 = vsub.f32 %v685, %v686
    %v688 = vand.u32 %v687, 4294901760
    %689 = vmatpush1.xpose.msra.mxu0 %v688
    %v690 = vand.u32 %v158, 4294901760
    %691 = vmatprep.mubr.f32.mxu0 %v690
    %v692 = vand.u32 %v154, 4294901760
    %693 = vmatmul.mubr.f32.gmra.mrb[0].mxu0 %v692
    %v694 = vpop.f32.mrb[0].mxu0
    %v695 = vadd.f32 %v302, %v694
    %v696 = vpop.f32.mrb[0].mxu0
    %v697 = vadd.f32 %v304, %v696
    %698 = vdwg.mxu0
    %v699 = vand.u32 %v55, 4294901760
    %v700 = vsub.f32 %v55, %v699
    %701 = vmatprep.subr.mxu0 %v700
    %v702 = vand.u32 %v54, 4294901760
    %v703 = vsub.f32 %v54, %v702
    %704 = vmatpush1.xpose.msra.mxu0 %v703
    %v705 = vand.u32 %v57, 4294901760
    %v706 = vsub.f32 %v57, %v705
    %707 = vmatprep.subr.mxu0 %v706
    %v708 = vand.u32 %v56, 4294901760
    %v709 = vsub.f32 %v56, %v708
    %710 = vmatpush1.xpose.msra.mxu0 %v709
    %v711 = vand.u32 %v59, 4294901760
    %v712 = vsub.f32 %v59, %v711
    %713 = vmatprep.subr.mxu0 %v712
    %v714 = vand.u32 %v58, 4294901760
    %v715 = vsub.f32 %v58, %v714
    %716 = vmatpush1.xpose.msra.mxu0 %v715
    %v717 = vand.u32 %v61, 4294901760
    %v718 = vsub.f32 %v61, %v717
    %719 = vmatprep.subr.mxu0 %v718
    %v720 = vand.u32 %v60, 4294901760
    %v721 = vsub.f32 %v60, %v720
    %722 = vmatpush1.xpose.msra.mxu0 %v721
    %v723 = vand.u32 %v63, 4294901760
    %v724 = vsub.f32 %v63, %v723
    %725 = vmatprep.subr.mxu0 %v724
    %v726 = vand.u32 %v62, 4294901760
    %v727 = vsub.f32 %v62, %v726
    %728 = vmatpush1.xpose.msra.mxu0 %v727
    %v729 = vand.u32 %v65, 4294901760
    %v730 = vsub.f32 %v65, %v729
    %731 = vmatprep.subr.mxu0 %v730
    %v732 = vand.u32 %v64, 4294901760
    %v733 = vsub.f32 %v64, %v732
    %734 = vmatpush1.xpose.msra.mxu0 %v733
    %v735 = vand.u32 %v67, 4294901760
    %v736 = vsub.f32 %v67, %v735
    %737 = vmatprep.subr.mxu0 %v736
    %v738 = vand.u32 %v66, 4294901760
    %v739 = vsub.f32 %v66, %v738
    %740 = vmatpush1.xpose.msra.mxu0 %v739
    %v741 = vand.u32 %v69, 4294901760
    %v742 = vsub.f32 %v69, %v741
    %743 = vmatprep.subr.mxu0 %v742
    %v744 = vand.u32 %v68, 4294901760
    %v745 = vsub.f32 %v68, %v744
    %746 = vmatpush1.xpose.msra.mxu0 %v745
    %v747 = vand.u32 %v71, 4294901760
    %v748 = vsub.f32 %v71, %v747
    %749 = vmatprep.subr.mxu0 %v748
    %v750 = vand.u32 %v70, 4294901760
    %v751 = vsub.f32 %v70, %v750
    %752 = vmatpush1.xpose.msra.mxu0 %v751
    %v753 = vand.u32 %v73, 4294901760
    %v754 = vsub.f32 %v73, %v753
    %755 = vmatprep.subr.mxu0 %v754
    %v756 = vand.u32 %v72, 4294901760
    %v757 = vsub.f32 %v72, %v756
    %758 = vmatpush1.xpose.msra.mxu0 %v757
    %v759 = vand.u32 %v75, 4294901760
    %v760 = vsub.f32 %v75, %v759
    %761 = vmatprep.subr.mxu0 %v760
    %v762 = vand.u32 %v74, 4294901760
    %v763 = vsub.f32 %v74, %v762
    %764 = vmatpush1.xpose.msra.mxu0 %v763
    %v765 = vand.u32 %v77, 4294901760
    %v766 = vsub.f32 %v77, %v765
    %767 = vmatprep.subr.mxu0 %v766
    %v768 = vand.u32 %v76, 4294901760
    %v769 = vsub.f32 %v76, %v768
    %770 = vmatpush1.xpose.msra.mxu0 %v769
    %v771 = vand.u32 %v79, 4294901760
    %v772 = vsub.f32 %v79, %v771
    %773 = vmatprep.subr.mxu0 %v772
    %v774 = vand.u32 %v78, 4294901760
    %v775 = vsub.f32 %v78, %v774
    %776 = vmatpush1.xpose.msra.mxu0 %v775
    %v777 = vand.u32 %v81, 4294901760
    %v778 = vsub.f32 %v81, %v777
    %779 = vmatprep.subr.mxu0 %v778
    %v780 = vand.u32 %v80, 4294901760
    %v781 = vsub.f32 %v80, %v780
    %782 = vmatpush1.xpose.msra.mxu0 %v781
    %v783 = vand.u32 %v83, 4294901760
    %v784 = vsub.f32 %v83, %v783
    %785 = vmatprep.subr.mxu0 %v784
    %v786 = vand.u32 %v82, 4294901760
    %v787 = vsub.f32 %v82, %v786
    %788 = vmatpush1.xpose.msra.mxu0 %v787
    %v789 = vand.u32 %v85, 4294901760
    %v790 = vsub.f32 %v85, %v789
    %791 = vmatprep.subr.mxu0 %v790
    %v792 = vand.u32 %v84, 4294901760
    %v793 = vsub.f32 %v84, %v792
    %794 = vmatpush1.xpose.msra.mxu0 %v793
    %v795 = vand.u32 %v87, 4294901760
    %v796 = vsub.f32 %v87, %v795
    %797 = vmatprep.subr.mxu0 %v796
    %v798 = vand.u32 %v86, 4294901760
    %v799 = vsub.f32 %v86, %v798
    %800 = vmatpush1.xpose.msra.mxu0 %v799
    %v801 = vand.u32 %v89, 4294901760
    %v802 = vsub.f32 %v89, %v801
    %803 = vmatprep.subr.mxu0 %v802
    %v804 = vand.u32 %v88, 4294901760
    %v805 = vsub.f32 %v88, %v804
    %806 = vmatpush1.xpose.msra.mxu0 %v805
    %v807 = vand.u32 %v91, 4294901760
    %v808 = vsub.f32 %v91, %v807
    %809 = vmatprep.subr.mxu0 %v808
    %v810 = vand.u32 %v90, 4294901760
    %v811 = vsub.f32 %v90, %v810
    %812 = vmatpush1.xpose.msra.mxu0 %v811
    %v813 = vand.u32 %v93, 4294901760
    %v814 = vsub.f32 %v93, %v813
    %815 = vmatprep.subr.mxu0 %v814
    %v816 = vand.u32 %v92, 4294901760
    %v817 = vsub.f32 %v92, %v816
    %818 = vmatpush1.xpose.msra.mxu0 %v817
    %v819 = vand.u32 %v95, 4294901760
    %v820 = vsub.f32 %v95, %v819
    %821 = vmatprep.subr.mxu0 %v820
    %v822 = vand.u32 %v94, 4294901760
    %v823 = vsub.f32 %v94, %v822
    %824 = vmatpush1.xpose.msra.mxu0 %v823
    %v825 = vand.u32 %v97, 4294901760
    %v826 = vsub.f32 %v97, %v825
    %827 = vmatprep.subr.mxu0 %v826
    %v828 = vand.u32 %v96, 4294901760
    %v829 = vsub.f32 %v96, %v828
    %830 = vmatpush1.xpose.msra.mxu0 %v829
    %v831 = vand.u32 %v99, 4294901760
    %v832 = vsub.f32 %v99, %v831
    %833 = vmatprep.subr.mxu0 %v832
    %v834 = vand.u32 %v98, 4294901760
    %v835 = vsub.f32 %v98, %v834
    %836 = vmatpush1.xpose.msra.mxu0 %v835
    %v837 = vand.u32 %v101, 4294901760
    %v838 = vsub.f32 %v101, %v837
    %839 = vmatprep.subr.mxu0 %v838
    %v840 = vand.u32 %v100, 4294901760
    %v841 = vsub.f32 %v100, %v840
    %842 = vmatpush1.xpose.msra.mxu0 %v841
    %v843 = vand.u32 %v103, 4294901760
    %v844 = vsub.f32 %v103, %v843
    %845 = vmatprep.subr.mxu0 %v844
    %v846 = vand.u32 %v102, 4294901760
    %v847 = vsub.f32 %v102, %v846
    %848 = vmatpush1.xpose.msra.mxu0 %v847
    %v849 = vand.u32 %v105, 4294901760
    %v850 = vsub.f32 %v105, %v849
    %851 = vmatprep.subr.mxu0 %v850
    %v852 = vand.u32 %v104, 4294901760
    %v853 = vsub.f32 %v104, %v852
    %854 = vmatpush1.xpose.msra.mxu0 %v853
    %v855 = vand.u32 %v107, 4294901760
    %v856 = vsub.f32 %v107, %v855
    %857 = vmatprep.subr.mxu0 %v856
    %v858 = vand.u32 %v106, 4294901760
    %v859 = vsub.f32 %v106, %v858
    %860 = vmatpush1.xpose.msra.mxu0 %v859
    %v861 = vand.u32 %v109, 4294901760
    %v862 = vsub.f32 %v109, %v861
    %863 = vmatprep.subr.mxu0 %v862
    %v864 = vand.u32 %v108, 4294901760
    %v865 = vsub.f32 %v108, %v864
    %866 = vmatpush1.xpose.msra.mxu0 %v865
    %v867 = vand.u32 %v111, 4294901760
    %v868 = vsub.f32 %v111, %v867
    %869 = vmatprep.subr.mxu0 %v868
    %v870 = vand.u32 %v110, 4294901760
    %v871 = vsub.f32 %v110, %v870
    %872 = vmatpush1.xpose.msra.mxu0 %v871
    %v873 = vand.u32 %v113, 4294901760
    %v874 = vsub.f32 %v113, %v873
    %875 = vmatprep.subr.mxu0 %v874
    %v876 = vand.u32 %v112, 4294901760
    %v877 = vsub.f32 %v112, %v876
    %878 = vmatpush1.xpose.msra.mxu0 %v877
    %v879 = vand.u32 %v115, 4294901760
    %v880 = vsub.f32 %v115, %v879
    %881 = vmatprep.subr.mxu0 %v880
    %v882 = vand.u32 %v114, 4294901760
    %v883 = vsub.f32 %v114, %v882
    %884 = vmatpush1.xpose.msra.mxu0 %v883
    %v885 = vand.u32 %v117, 4294901760
    %v886 = vsub.f32 %v117, %v885
    %887 = vmatprep.subr.mxu0 %v886
    %v888 = vand.u32 %v116, 4294901760
    %v889 = vsub.f32 %v116, %v888
    %890 = vmatpush1.xpose.msra.mxu0 %v889
    %v891 = vand.u32 %v158, 4294901760
    %v892 = vsub.f32 %v158, %v891
    %893 = vmatprep.mubr.f32.mxu0 %v892
    %v894 = vand.u32 %v154, 4294901760
    %v895 = vsub.f32 %v154, %v894
    %896 = vmatmul.mubr.f32.gmra.mrb[0].mxu0 %v895
    %v897 = vpop.f32.mrb[0].mxu0
    %v898 = vadd.f32 %v695, %v897
    %v899 = vpop.f32.mrb[0].mxu0
    %v900 = vadd.f32 %v697, %v899
    %901 = vdwg.mxu0
    %v902 = vand.u32 %v55, 4294901760
    %903 = vmatprep.subr.mxu0 %v902
    %v904 = vand.u32 %v54, 4294901760
    %905 = vmatpush1.xpose.msra.mxu0 %v904
    %v906 = vand.u32 %v57, 4294901760
    %907 = vmatprep.subr.mxu0 %v906
    %v908 = vand.u32 %v56, 4294901760
    %909 = vmatpush1.xpose.msra.mxu0 %v908
    %v910 = vand.u32 %v59, 4294901760
    %911 = vmatprep.subr.mxu0 %v910
    %v912 = vand.u32 %v58, 4294901760
    %913 = vmatpush1.xpose.msra.mxu0 %v912
    %v914 = vand.u32 %v61, 4294901760
    %915 = vmatprep.subr.mxu0 %v914
    %v916 = vand.u32 %v60, 4294901760
    %917 = vmatpush1.xpose.msra.mxu0 %v916
    %v918 = vand.u32 %v63, 4294901760
    %919 = vmatprep.subr.mxu0 %v918
    %v920 = vand.u32 %v62, 4294901760
    %921 = vmatpush1.xpose.msra.mxu0 %v920
    %v922 = vand.u32 %v65, 4294901760
    %923 = vmatprep.subr.mxu0 %v922
    %v924 = vand.u32 %v64, 4294901760
    %925 = vmatpush1.xpose.msra.mxu0 %v924
    %v926 = vand.u32 %v67, 4294901760
    %927 = vmatprep.subr.mxu0 %v926
    %v928 = vand.u32 %v66, 4294901760
    %929 = vmatpush1.xpose.msra.mxu0 %v928
    %v930 = vand.u32 %v69, 4294901760
    %931 = vmatprep.subr.mxu0 %v930
    %v932 = vand.u32 %v68, 4294901760
    %933 = vmatpush1.xpose.msra.mxu0 %v932
    %v934 = vand.u32 %v71, 4294901760
    %935 = vmatprep.subr.mxu0 %v934
    %v936 = vand.u32 %v70, 4294901760
    %937 = vmatpush1.xpose.msra.mxu0 %v936
    %v938 = vand.u32 %v73, 4294901760
    %939 = vmatprep.subr.mxu0 %v938
    %v940 = vand.u32 %v72, 4294901760
    %941 = vmatpush1.xpose.msra.mxu0 %v940
    %v942 = vand.u32 %v75, 4294901760
    %943 = vmatprep.subr.mxu0 %v942
    %v944 = vand.u32 %v74, 4294901760
    %945 = vmatpush1.xpose.msra.mxu0 %v944
    %v946 = vand.u32 %v77, 4294901760
    %947 = vmatprep.subr.mxu0 %v946
    %v948 = vand.u32 %v76, 4294901760
    %949 = vmatpush1.xpose.msra.mxu0 %v948
    %v950 = vand.u32 %v79, 4294901760
    %951 = vmatprep.subr.mxu0 %v950
    %v952 = vand.u32 %v78, 4294901760
    %953 = vmatpush1.xpose.msra.mxu0 %v952
    %v954 = vand.u32 %v81, 4294901760
    %955 = vmatprep.subr.mxu0 %v954
    %v956 = vand.u32 %v80, 4294901760
    %957 = vmatpush1.xpose.msra.mxu0 %v956
    %v958 = vand.u32 %v83, 4294901760
    %959 = vmatprep.subr.mxu0 %v958
    %v960 = vand.u32 %v82, 4294901760
    %961 = vmatpush1.xpose.msra.mxu0 %v960
    %v962 = vand.u32 %v85, 4294901760
    %963 = vmatprep.subr.mxu0 %v962
    %v964 = vand.u32 %v84, 4294901760
    %965 = vmatpush1.xpose.msra.mxu0 %v964
    %v966 = vand.u32 %v87, 4294901760
    %967 = vmatprep.subr.mxu0 %v966
    %v968 = vand.u32 %v86, 4294901760
    %969 = vmatpush1.xpose.msra.mxu0 %v968
    %v970 = vand.u32 %v89, 4294901760
    %971 = vmatprep.subr.mxu0 %v970
    %v972 = vand.u32 %v88, 4294901760
    %973 = vmatpush1.xpose.msra.mxu0 %v972
    %v974 = vand.u32 %v91, 4294901760
    %975 = vmatprep.subr.mxu0 %v974
    %v976 = vand.u32 %v90, 4294901760
    %977 = vmatpush1.xpose.msra.mxu0 %v976
    %v978 = vand.u32 %v93, 4294901760
    %979 = vmatprep.subr.mxu0 %v978
    %v980 = vand.u32 %v92, 4294901760
    %981 = vmatpush1.xpose.msra.mxu0 %v980
    %v982 = vand.u32 %v95, 4294901760
    %983 = vmatprep.subr.mxu0 %v982
    %v984 = vand.u32 %v94, 4294901760
    %985 = vmatpush1.xpose.msra.mxu0 %v984
    %v986 = vand.u32 %v97, 4294901760
    %987 = vmatprep.subr.mxu0 %v986
    %v988 = vand.u32 %v96, 4294901760
    %989 = vmatpush1.xpose.msra.mxu0 %v988
    %v990 = vand.u32 %v99, 4294901760
    %991 = vmatprep.subr.mxu0 %v990
    %v992 = vand.u32 %v98, 4294901760
    %993 = vmatpush1.xpose.msra.mxu0 %v992
    %v994 = vand.u32 %v101, 4294901760
    %995 = vmatprep.subr.mxu0 %v994
    %v996 = vand.u32 %v100, 4294901760
    %997 = vmatpush1.xpose.msra.mxu0 %v996
    %v998 = vand.u32 %v103, 4294901760
    %999 = vmatprep.subr.mxu0 %v998
    %v1000 = vand.u32 %v102, 4294901760
    %1001 = vmatpush1.xpose.msra.mxu0 %v1000
    %v1002 = vand.u32 %v105, 4294901760
    %1003 = vmatprep.subr.mxu0 %v1002
    %v1004 = vand.u32 %v104, 4294901760
    %1005 = vmatpush1.xpose.msra.mxu0 %v1004
    %v1006 = vand.u32 %v107, 4294901760
    %1007 = vmatprep.subr.mxu0 %v1006
    %v1008 = vand.u32 %v106, 4294901760
    %1009 = vmatpush1.xpose.msra.mxu0 %v1008
    %v1010 = vand.u32 %v109, 4294901760
    %1011 = vmatprep.subr.mxu0 %v1010
    %v1012 = vand.u32 %v108, 4294901760
    %1013 = vmatpush1.xpose.msra.mxu0 %v1012
    %v1014 = vand.u32 %v111, 4294901760
    %1015 = vmatprep.subr.mxu0 %v1014
    %v1016 = vand.u32 %v110, 4294901760
    %1017 = vmatpush1.xpose.msra.mxu0 %v1016
    %v1018 = vand.u32 %v113, 4294901760
    %1019 = vmatprep.subr.mxu0 %v1018
    %v1020 = vand.u32 %v112, 4294901760
    %1021 = vmatpush1.xpose.msra.mxu0 %v1020
    %v1022 = vand.u32 %v115, 4294901760
    %1023 = vmatprep.subr.mxu0 %v1022
    %v1024 = vand.u32 %v114, 4294901760
    %1025 = vmatpush1.xpose.msra.mxu0 %v1024
    %v1026 = vand.u32 %v117, 4294901760
    %1027 = vmatprep.subr.mxu0 %v1026
    %v1028 = vand.u32 %v116, 4294901760
    %1029 = vmatpush1.xpose.msra.mxu0 %v1028
    %v1030 = vand.u32 %v158, 4294901760
    %v1031 = vsub.f32 %v158, %v1030
    %v1032 = vand.u32 %v1031, 4294901760
    %1033 = vmatprep.mubr.f32.mxu0 %v1032
    %v1034 = vand.u32 %v154, 4294901760
    %v1035 = vsub.f32 %v154, %v1034
    %v1036 = vand.u32 %v1035, 4294901760
    %1037 = vmatmul.mubr.f32.gmra.mrb[0].mxu0 %v1036
    %v1038 = vpop.f32.mrb[0].mxu0
    %v1039 = vadd.f32 %v898, %v1038
    %v1040 = vpop.f32.mrb[0].mxu0
    %v1041 = vadd.f32 %v900, %v1040
    %1042 = vdwg.mxu0
    %v1043 = vand.u32 %v55, 4294901760
    %v1044 = vsub.f32 %v55, %v1043
    %v1045 = vand.u32 %v1044, 4294901760
    %1046 = vmatprep.subr.mxu0 %v1045
    %v1047 = vand.u32 %v54, 4294901760
    %v1048 = vsub.f32 %v54, %v1047
    %v1049 = vand.u32 %v1048, 4294901760
    %1050 = vmatpush1.xpose.msra.mxu0 %v1049
    %v1051 = vand.u32 %v57, 4294901760
    %v1052 = vsub.f32 %v57, %v1051
    %v1053 = vand.u32 %v1052, 4294901760
    %1054 = vmatprep.subr.mxu0 %v1053
    %v1055 = vand.u32 %v56, 4294901760
    %v1056 = vsub.f32 %v56, %v1055
    %v1057 = vand.u32 %v1056, 4294901760
    %1058 = vmatpush1.xpose.msra.mxu0 %v1057
    %v1059 = vand.u32 %v59, 4294901760
    %v1060 = vsub.f32 %v59, %v1059
    %v1061 = vand.u32 %v1060, 4294901760
    %1062 = vmatprep.subr.mxu0 %v1061
    %v1063 = vand.u32 %v58, 4294901760
    %v1064 = vsub.f32 %v58, %v1063
    %v1065 = vand.u32 %v1064, 4294901760
    %1066 = vmatpush1.xpose.msra.mxu0 %v1065
    %v1067 = vand.u32 %v61, 4294901760
    %v1068 = vsub.f32 %v61, %v1067
    %v1069 = vand.u32 %v1068, 4294901760
    %1070 = vmatprep.subr.mxu0 %v1069
    %v1071 = vand.u32 %v60, 4294901760
    %v1072 = vsub.f32 %v60, %v1071
    %v1073 = vand.u32 %v1072, 4294901760
    %1074 = vmatpush1.xpose.msra.mxu0 %v1073
    %v1075 = vand.u32 %v63, 4294901760
    %v1076 = vsub.f32 %v63, %v1075
    %v1077 = vand.u32 %v1076, 4294901760
    %1078 = vmatprep.subr.mxu0 %v1077
    %v1079 = vand.u32 %v62, 4294901760
    %v1080 = vsub.f32 %v62, %v1079
    %v1081 = vand.u32 %v1080, 4294901760
    %1082 = vmatpush1.xpose.msra.mxu0 %v1081
    %v1083 = vand.u32 %v65, 4294901760
    %v1084 = vsub.f32 %v65, %v1083
    %v1085 = vand.u32 %v1084, 4294901760
    %1086 = vmatprep.subr.mxu0 %v1085
    %v1087 = vand.u32 %v64, 4294901760
    %v1088 = vsub.f32 %v64, %v1087
    %v1089 = vand.u32 %v1088, 4294901760
    %1090 = vmatpush1.xpose.msra.mxu0 %v1089
    %v1091 = vand.u32 %v67, 4294901760
    %v1092 = vsub.f32 %v67, %v1091
    %v1093 = vand.u32 %v1092, 4294901760
    %1094 = vmatprep.subr.mxu0 %v1093
    %v1095 = vand.u32 %v66, 4294901760
    %v1096 = vsub.f32 %v66, %v1095
    %v1097 = vand.u32 %v1096, 4294901760
    %1098 = vmatpush1.xpose.msra.mxu0 %v1097
    %v1099 = vand.u32 %v69, 4294901760
    %v1100 = vsub.f32 %v69, %v1099
    %v1101 = vand.u32 %v1100, 4294901760
    %1102 = vmatprep.subr.mxu0 %v1101
    %v1103 = vand.u32 %v68, 4294901760
    %v1104 = vsub.f32 %v68, %v1103
    %v1105 = vand.u32 %v1104, 4294901760
    %1106 = vmatpush1.xpose.msra.mxu0 %v1105
    %v1107 = vand.u32 %v71, 4294901760
    %v1108 = vsub.f32 %v71, %v1107
    %v1109 = vand.u32 %v1108, 4294901760
    %1110 = vmatprep.subr.mxu0 %v1109
    %v1111 = vand.u32 %v70, 4294901760
    %v1112 = vsub.f32 %v70, %v1111
    %v1113 = vand.u32 %v1112, 4294901760
    %1114 = vmatpush1.xpose.msra.mxu0 %v1113
    %v1115 = vand.u32 %v73, 4294901760
    %v1116 = vsub.f32 %v73, %v1115
    %v1117 = vand.u32 %v1116, 4294901760
    %1118 = vmatprep.subr.mxu0 %v1117
    %v1119 = vand.u32 %v72, 4294901760
    %v1120 = vsub.f32 %v72, %v1119
    %v1121 = vand.u32 %v1120, 4294901760
    %1122 = vmatpush1.xpose.msra.mxu0 %v1121
    %v1123 = vand.u32 %v75, 4294901760
    %v1124 = vsub.f32 %v75, %v1123
    %v1125 = vand.u32 %v1124, 4294901760
    %1126 = vmatprep.subr.mxu0 %v1125
    %v1127 = vand.u32 %v74, 4294901760
    %v1128 = vsub.f32 %v74, %v1127
    %v1129 = vand.u32 %v1128, 4294901760
    %1130 = vmatpush1.xpose.msra.mxu0 %v1129
    %v1131 = vand.u32 %v77, 4294901760
    %v1132 = vsub.f32 %v77, %v1131
    %v1133 = vand.u32 %v1132, 4294901760
    %1134 = vmatprep.subr.mxu0 %v1133
    %v1135 = vand.u32 %v76, 4294901760
    %v1136 = vsub.f32 %v76, %v1135
    %v1137 = vand.u32 %v1136, 4294901760
    %1138 = vmatpush1.xpose.msra.mxu0 %v1137
    %v1139 = vand.u32 %v79, 4294901760
    %v1140 = vsub.f32 %v79, %v1139
    %v1141 = vand.u32 %v1140, 4294901760
    %1142 = vmatprep.subr.mxu0 %v1141
    %v1143 = vand.u32 %v78, 4294901760
    %v1144 = vsub.f32 %v78, %v1143
    %v1145 = vand.u32 %v1144, 4294901760
    %1146 = vmatpush1.xpose.msra.mxu0 %v1145
    %v1147 = vand.u32 %v81, 4294901760
    %v1148 = vsub.f32 %v81, %v1147
    %v1149 = vand.u32 %v1148, 4294901760
    %1150 = vmatprep.subr.mxu0 %v1149
    %v1151 = vand.u32 %v80, 4294901760
    %v1152 = vsub.f32 %v80, %v1151
    %v1153 = vand.u32 %v1152, 4294901760
    %1154 = vmatpush1.xpose.msra.mxu0 %v1153
    %v1155 = vand.u32 %v83, 4294901760
    %v1156 = vsub.f32 %v83, %v1155
    %v1157 = vand.u32 %v1156, 4294901760
    %1158 = vmatprep.subr.mxu0 %v1157
    %v1159 = vand.u32 %v82, 4294901760
    %v1160 = vsub.f32 %v82, %v1159
    %v1161 = vand.u32 %v1160, 4294901760
    %1162 = vmatpush1.xpose.msra.mxu0 %v1161
    %v1163 = vand.u32 %v85, 4294901760
    %v1164 = vsub.f32 %v85, %v1163
    %v1165 = vand.u32 %v1164, 4294901760
    %1166 = vmatprep.subr.mxu0 %v1165
    %v1167 = vand.u32 %v84, 4294901760
    %v1168 = vsub.f32 %v84, %v1167
    %v1169 = vand.u32 %v1168, 4294901760
    %1170 = vmatpush1.xpose.msra.mxu0 %v1169
    %v1171 = vand.u32 %v87, 4294901760
    %v1172 = vsub.f32 %v87, %v1171
    %v1173 = vand.u32 %v1172, 4294901760
    %1174 = vmatprep.subr.mxu0 %v1173
    %v1175 = vand.u32 %v86, 4294901760
    %v1176 = vsub.f32 %v86, %v1175
    %v1177 = vand.u32 %v1176, 4294901760
    %1178 = vmatpush1.xpose.msra.mxu0 %v1177
    %v1179 = vand.u32 %v89, 4294901760
    %v1180 = vsub.f32 %v89, %v1179
    %v1181 = vand.u32 %v1180, 4294901760
    %1182 = vmatprep.subr.mxu0 %v1181
    %v1183 = vand.u32 %v88, 4294901760
    %v1184 = vsub.f32 %v88, %v1183
    %v1185 = vand.u32 %v1184, 4294901760
    %1186 = vmatpush1.xpose.msra.mxu0 %v1185
    %v1187 = vand.u32 %v91, 4294901760
    %v1188 = vsub.f32 %v91, %v1187
    %v1189 = vand.u32 %v1188, 4294901760
    %1190 = vmatprep.subr.mxu0 %v1189
    %v1191 = vand.u32 %v90, 4294901760
    %v1192 = vsub.f32 %v90, %v1191
    %v1193 = vand.u32 %v1192, 4294901760
    %1194 = vmatpush1.xpose.msra.mxu0 %v1193
    %v1195 = vand.u32 %v93, 4294901760
    %v1196 = vsub.f32 %v93, %v1195
    %v1197 = vand.u32 %v1196, 4294901760
    %1198 = vmatprep.subr.mxu0 %v1197
    %v1199 = vand.u32 %v92, 4294901760
    %v1200 = vsub.f32 %v92, %v1199
    %v1201 = vand.u32 %v1200, 4294901760
    %1202 = vmatpush1.xpose.msra.mxu0 %v1201
    %v1203 = vand.u32 %v95, 4294901760
    %v1204 = vsub.f32 %v95, %v1203
    %v1205 = vand.u32 %v1204, 4294901760
    %1206 = vmatprep.subr.mxu0 %v1205
    %v1207 = vand.u32 %v94, 4294901760
    %v1208 = vsub.f32 %v94, %v1207
    %v1209 = vand.u32 %v1208, 4294901760
    %1210 = vmatpush1.xpose.msra.mxu0 %v1209
    %v1211 = vand.u32 %v97, 4294901760
    %v1212 = vsub.f32 %v97, %v1211
    %v1213 = vand.u32 %v1212, 4294901760
    %1214 = vmatprep.subr.mxu0 %v1213
    %v1215 = vand.u32 %v96, 4294901760
    %v1216 = vsub.f32 %v96, %v1215
    %v1217 = vand.u32 %v1216, 4294901760
    %1218 = vmatpush1.xpose.msra.mxu0 %v1217
    %v1219 = vand.u32 %v99, 4294901760
    %v1220 = vsub.f32 %v99, %v1219
    %v1221 = vand.u32 %v1220, 4294901760
    %1222 = vmatprep.subr.mxu0 %v1221
    %v1223 = vand.u32 %v98, 4294901760
    %v1224 = vsub.f32 %v98, %v1223
    %v1225 = vand.u32 %v1224, 4294901760
    %1226 = vmatpush1.xpose.msra.mxu0 %v1225
    %v1227 = vand.u32 %v101, 4294901760
    %v1228 = vsub.f32 %v101, %v1227
    %v1229 = vand.u32 %v1228, 4294901760
    %1230 = vmatprep.subr.mxu0 %v1229
    %v1231 = vand.u32 %v100, 4294901760
    %v1232 = vsub.f32 %v100, %v1231
    %v1233 = vand.u32 %v1232, 4294901760
    %1234 = vmatpush1.xpose.msra.mxu0 %v1233
    %v1235 = vand.u32 %v103, 4294901760
    %v1236 = vsub.f32 %v103, %v1235
    %v1237 = vand.u32 %v1236, 4294901760
    %1238 = vmatprep.subr.mxu0 %v1237
    %v1239 = vand.u32 %v102, 4294901760
    %v1240 = vsub.f32 %v102, %v1239
    %v1241 = vand.u32 %v1240, 4294901760
    %1242 = vmatpush1.xpose.msra.mxu0 %v1241
    %v1243 = vand.u32 %v105, 4294901760
    %v1244 = vsub.f32 %v105, %v1243
    %v1245 = vand.u32 %v1244, 4294901760
    %1246 = vmatprep.subr.mxu0 %v1245
    %v1247 = vand.u32 %v104, 4294901760
    %v1248 = vsub.f32 %v104, %v1247
    %v1249 = vand.u32 %v1248, 4294901760
    %1250 = vmatpush1.xpose.msra.mxu0 %v1249
    %v1251 = vand.u32 %v107, 4294901760
    %v1252 = vsub.f32 %v107, %v1251
    %v1253 = vand.u32 %v1252, 4294901760
    %1254 = vmatprep.subr.mxu0 %v1253
    %v1255 = vand.u32 %v106, 4294901760
    %v1256 = vsub.f32 %v106, %v1255
    %v1257 = vand.u32 %v1256, 4294901760
    %1258 = vmatpush1.xpose.msra.mxu0 %v1257
    %v1259 = vand.u32 %v109, 4294901760
    %v1260 = vsub.f32 %v109, %v1259
    %v1261 = vand.u32 %v1260, 4294901760
    %1262 = vmatprep.subr.mxu0 %v1261
    %v1263 = vand.u32 %v108, 4294901760
    %v1264 = vsub.f32 %v108, %v1263
    %v1265 = vand.u32 %v1264, 4294901760
    %1266 = vmatpush1.xpose.msra.mxu0 %v1265
    %v1267 = vand.u32 %v111, 4294901760
    %v1268 = vsub.f32 %v111, %v1267
    %v1269 = vand.u32 %v1268, 4294901760
    %1270 = vmatprep.subr.mxu0 %v1269
    %v1271 = vand.u32 %v110, 4294901760
    %v1272 = vsub.f32 %v110, %v1271
    %v1273 = vand.u32 %v1272, 4294901760
    %1274 = vmatpush1.xpose.msra.mxu0 %v1273
    %v1275 = vand.u32 %v113, 4294901760
    %v1276 = vsub.f32 %v113, %v1275
    %v1277 = vand.u32 %v1276, 4294901760
    %1278 = vmatprep.subr.mxu0 %v1277
    %v1279 = vand.u32 %v112, 4294901760
    %v1280 = vsub.f32 %v112, %v1279
    %v1281 = vand.u32 %v1280, 4294901760
    %1282 = vmatpush1.xpose.msra.mxu0 %v1281
    %v1283 = vand.u32 %v115, 4294901760
    %v1284 = vsub.f32 %v115, %v1283
    %v1285 = vand.u32 %v1284, 4294901760
    %1286 = vmatprep.subr.mxu0 %v1285
    %v1287 = vand.u32 %v114, 4294901760
    %v1288 = vsub.f32 %v114, %v1287
    %v1289 = vand.u32 %v1288, 4294901760
    %1290 = vmatpush1.xpose.msra.mxu0 %v1289
    %v1291 = vand.u32 %v117, 4294901760
    %v1292 = vsub.f32 %v117, %v1291
    %v1293 = vand.u32 %v1292, 4294901760
    %1294 = vmatprep.subr.mxu0 %v1293
    %v1295 = vand.u32 %v116, 4294901760
    %v1296 = vsub.f32 %v116, %v1295
    %v1297 = vand.u32 %v1296, 4294901760
    %1298 = vmatpush1.xpose.msra.mxu0 %v1297
    %v1299 = vand.u32 %v158, 4294901760
    %1300 = vmatprep.mubr.f32.mxu0 %v1299
    %v1301 = vand.u32 %v154, 4294901760
    %1302 = vmatmul.mubr.f32.gmra.mrb[0].mxu0 %v1301
    %v1303 = vpop.f32.mrb[0].mxu0
    %v1304 = vadd.f32 %v1039, %v1303
    %v1305 = vpop.f32.mrb[0].mxu0
    %v1306 = vadd.f32 %v1041, %v1305
    %1307 = vdwg.mxu0
    %v1308 = vand.u32 %v55, 4294901760
    %1309 = vmatprep.subr.mxu0 %v1308
    %v1310 = vand.u32 %v54, 4294901760
    %1311 = vmatpush1.xpose.msra.mxu0 %v1310
    %v1312 = vand.u32 %v57, 4294901760
    %1313 = vmatprep.subr.mxu0 %v1312
    %v1314 = vand.u32 %v56, 4294901760
    %1315 = vmatpush1.xpose.msra.mxu0 %v1314
    %v1316 = vand.u32 %v59, 4294901760
    %1317 = vmatprep.subr.mxu0 %v1316
    %v1318 = vand.u32 %v58, 4294901760
    %1319 = vmatpush1.xpose.msra.mxu0 %v1318
    %v1320 = vand.u32 %v61, 4294901760
    %1321 = vmatprep.subr.mxu0 %v1320
    %v1322 = vand.u32 %v60, 4294901760
    %1323 = vmatpush1.xpose.msra.mxu0 %v1322
    %v1324 = vand.u32 %v63, 4294901760
    %1325 = vmatprep.subr.mxu0 %v1324
    %v1326 = vand.u32 %v62, 4294901760
    %1327 = vmatpush1.xpose.msra.mxu0 %v1326
    %v1328 = vand.u32 %v65, 4294901760
    %1329 = vmatprep.subr.mxu0 %v1328
    %v1330 = vand.u32 %v64, 4294901760
    %1331 = vmatpush1.xpose.msra.mxu0 %v1330
    %v1332 = vand.u32 %v67, 4294901760
    %1333 = vmatprep.subr.mxu0 %v1332
    %v1334 = vand.u32 %v66, 4294901760
    %1335 = vmatpush1.xpose.msra.mxu0 %v1334
    %v1336 = vand.u32 %v69, 4294901760
    %1337 = vmatprep.subr.mxu0 %v1336
    %v1338 = vand.u32 %v68, 4294901760
    %1339 = vmatpush1.xpose.msra.mxu0 %v1338
    %v1340 = vand.u32 %v71, 4294901760
    %1341 = vmatprep.subr.mxu0 %v1340
    %v1342 = vand.u32 %v70, 4294901760
    %1343 = vmatpush1.xpose.msra.mxu0 %v1342
    %v1344 = vand.u32 %v73, 4294901760
    %1345 = vmatprep.subr.mxu0 %v1344
    %v1346 = vand.u32 %v72, 4294901760
    %1347 = vmatpush1.xpose.msra.mxu0 %v1346
    %v1348 = vand.u32 %v75, 4294901760
    %1349 = vmatprep.subr.mxu0 %v1348
    %v1350 = vand.u32 %v74, 4294901760
    %1351 = vmatpush1.xpose.msra.mxu0 %v1350
    %v1352 = vand.u32 %v77, 4294901760
    %1353 = vmatprep.subr.mxu0 %v1352
    %v1354 = vand.u32 %v76, 4294901760
    %1355 = vmatpush1.xpose.msra.mxu0 %v1354
    %v1356 = vand.u32 %v79, 4294901760
    %1357 = vmatprep.subr.mxu0 %v1356
    %v1358 = vand.u32 %v78, 4294901760
    %1359 = vmatpush1.xpose.msra.mxu0 %v1358
    %v1360 = vand.u32 %v81, 4294901760
    %1361 = vmatprep.subr.mxu0 %v1360
    %v1362 = vand.u32 %v80, 4294901760
    %1363 = vmatpush1.xpose.msra.mxu0 %v1362
    %v1364 = vand.u32 %v83, 4294901760
    %1365 = vmatprep.subr.mxu0 %v1364
    %v1366 = vand.u32 %v82, 4294901760
    %1367 = vmatpush1.xpose.msra.mxu0 %v1366
    %v1368 = vand.u32 %v85, 4294901760
    %1369 = vmatprep.subr.mxu0 %v1368
    %v1370 = vand.u32 %v84, 4294901760
    %1371 = vmatpush1.xpose.msra.mxu0 %v1370
    %v1372 = vand.u32 %v87, 4294901760
    %1373 = vmatprep.subr.mxu0 %v1372
    %v1374 = vand.u32 %v86, 4294901760
    %1375 = vmatpush1.xpose.msra.mxu0 %v1374
    %v1376 = vand.u32 %v89, 4294901760
    %1377 = vmatprep.subr.mxu0 %v1376
    %v1378 = vand.u32 %v88, 4294901760
    %1379 = vmatpush1.xpose.msra.mxu0 %v1378
    %v1380 = vand.u32 %v91, 4294901760
    %1381 = vmatprep.subr.mxu0 %v1380
    %v1382 = vand.u32 %v90, 4294901760
    %1383 = vmatpush1.xpose.msra.mxu0 %v1382
    %v1384 = vand.u32 %v93, 4294901760
    %1385 = vmatprep.subr.mxu0 %v1384
    %v1386 = vand.u32 %v92, 4294901760
    %1387 = vmatpush1.xpose.msra.mxu0 %v1386
    %v1388 = vand.u32 %v95, 4294901760
    %1389 = vmatprep.subr.mxu0 %v1388
    %v1390 = vand.u32 %v94, 4294901760
    %1391 = vmatpush1.xpose.msra.mxu0 %v1390
    %v1392 = vand.u32 %v97, 4294901760
    %1393 = vmatprep.subr.mxu0 %v1392
    %v1394 = vand.u32 %v96, 4294901760
    %1395 = vmatpush1.xpose.msra.mxu0 %v1394
    %v1396 = vand.u32 %v99, 4294901760
    %1397 = vmatprep.subr.mxu0 %v1396
    %v1398 = vand.u32 %v98, 4294901760
    %1399 = vmatpush1.xpose.msra.mxu0 %v1398
    %v1400 = vand.u32 %v101, 4294901760
    %1401 = vmatprep.subr.mxu0 %v1400
    %v1402 = vand.u32 %v100, 4294901760
    %1403 = vmatpush1.xpose.msra.mxu0 %v1402
    %v1404 = vand.u32 %v103, 4294901760
    %1405 = vmatprep.subr.mxu0 %v1404
    %v1406 = vand.u32 %v102, 4294901760
    %1407 = vmatpush1.xpose.msra.mxu0 %v1406
    %v1408 = vand.u32 %v105, 4294901760
    %1409 = vmatprep.subr.mxu0 %v1408
    %v1410 = vand.u32 %v104, 4294901760
    %1411 = vmatpush1.xpose.msra.mxu0 %v1410
    %v1412 = vand.u32 %v107, 4294901760
    %1413 = vmatprep.subr.mxu0 %v1412
    %v1414 = vand.u32 %v106, 4294901760
    %1415 = vmatpush1.xpose.msra.mxu0 %v1414
    %v1416 = vand.u32 %v109, 4294901760
    %1417 = vmatprep.subr.mxu0 %v1416
    %v1418 = vand.u32 %v108, 4294901760
    %1419 = vmatpush1.xpose.msra.mxu0 %v1418
    %v1420 = vand.u32 %v111, 4294901760
    %1421 = vmatprep.subr.mxu0 %v1420
    %v1422 = vand.u32 %v110, 4294901760
    %1423 = vmatpush1.xpose.msra.mxu0 %v1422
    %v1424 = vand.u32 %v113, 4294901760
    %1425 = vmatprep.subr.mxu0 %v1424
    %v1426 = vand.u32 %v112, 4294901760
    %1427 = vmatpush1.xpose.msra.mxu0 %v1426
    %v1428 = vand.u32 %v115, 4294901760
    %1429 = vmatprep.subr.mxu0 %v1428
    %v1430 = vand.u32 %v114, 4294901760
    %1431 = vmatpush1.xpose.msra.mxu0 %v1430
    %v1432 = vand.u32 %v117, 4294901760
    %1433 = vmatprep.subr.mxu0 %v1432
    %v1434 = vand.u32 %v116, 4294901760
    %1435 = vmatpush1.xpose.msra.mxu0 %v1434
    %v1436 = vand.u32 %v158, 4294901760
    %1437 = vmatprep.mubr.f32.mxu0 %v1436
    %v1438 = vand.u32 %v154, 4294901760
    %1439 = vmatmul.mubr.f32.gmra.mrb[0].mxu0 %v1438
    %v1440 = vpop.f32.mrb[0].mxu0
    %v1441 = vadd.f32 %v1304, %v1440
    %v1442 = vpop.f32.mrb[0].mxu0
    %v1443 = vadd.f32 %v1306, %v1442
    %1444 = vdwg.mxu0
    %v1445 = vand.u32 %v119, 4294901760
    %1446 = vmatprep.subr.mxu0 %v1445
    %v1447 = vand.u32 %v118, 4294901760
    %1448 = vmatpush1.xpose.msra.mxu0 %v1447
    %v1449 = vand.u32 %v121, 4294901760
    %1450 = vmatprep.subr.mxu0 %v1449
    %v1451 = vand.u32 %v120, 4294901760
    %1452 = vmatpush1.xpose.msra.mxu0 %v1451
    %v1453 = vand.u32 %v123, 4294901760
    %1454 = vmatprep.subr.mxu0 %v1453
    %v1455 = vand.u32 %v122, 4294901760
    %1456 = vmatpush1.xpose.msra.mxu0 %v1455
    %v1457 = vand.u32 %v125, 4294901760
    %1458 = vmatprep.subr.mxu0 %v1457
    %v1459 = vand.u32 %v124, 4294901760
    %1460 = vmatpush1.xpose.msra.mxu0 %v1459
    %v1461 = vand.u32 %v127, 4294901760
    %1462 = vmatprep.subr.mxu0 %v1461
    %v1463 = vand.u32 %v126, 4294901760
    %1464 = vmatpush1.xpose.msra.mxu0 %v1463
    %v1465 = vand.u32 %v129, 4294901760
    %1466 = vmatprep.subr.mxu0 %v1465
    %v1467 = vand.u32 %v128, 4294901760
    %1468 = vmatpush1.xpose.msra.mxu0 %v1467
    %v1469 = vand.u32 %v131, 4294901760
    %1470 = vmatprep.subr.mxu0 %v1469
    %v1471 = vand.u32 %v130, 4294901760
    %1472 = vmatpush1.xpose.msra.mxu0 %v1471
    %v1473 = vand.u32 %v133, 4294901760
    %1474 = vmatprep.subr.mxu0 %v1473
    %v1475 = vand.u32 %v132, 4294901760
    %1476 = vmatpush1.xpose.msra.mxu0 %v1475
    %v1477 = vand.u32 %v135, 4294901760
    %1478 = vmatprep.subr.mxu0 %v1477
    %v1479 = vand.u32 %v134, 4294901760
    %1480 = vmatpush1.xpose.msra.mxu0 %v1479
    %v1481 = vand.u32 %v137, 4294901760
    %1482 = vmatprep.subr.mxu0 %v1481
    %v1483 = vand.u32 %v136, 4294901760
    %1484 = vmatpush1.xpose.msra.mxu0 %v1483
    %v1485 = vand.u32 %v139, 4294901760
    %1486 = vmatprep.subr.mxu0 %v1485
    %v1487 = vand.u32 %v138, 4294901760
    %1488 = vmatpush1.xpose.msra.mxu0 %v1487
    %v1489 = vand.u32 %v141, 4294901760
    %1490 = vmatprep.subr.mxu0 %v1489
    %v1491 = vand.u32 %v140, 4294901760
    %1492 = vmatpush1.xpose.msra.mxu0 %v1491
    %v1493 = vand.u32 %v143, 4294901760
    %1494 = vmatprep.subr.mxu0 %v1493
    %v1495 = vand.u32 %v142, 4294901760
    %1496 = vmatpush1.xpose.msra.mxu0 %v1495
    %v1497 = vand.u32 %v145, 4294901760
    %1498 = vmatprep.subr.mxu0 %v1497
    %v1499 = vand.u32 %v144, 4294901760
    %1500 = vmatpush1.xpose.msra.mxu0 %v1499
    %v1501 = vand.u32 %v147, 4294901760
    %1502 = vmatprep.subr.mxu0 %v1501
    %v1503 = vand.u32 %v146, 4294901760
    %1504 = vmatpush1.xpose.msra.mxu0 %v1503
    %v1505 = vand.u32 %v149, 4294901760
    %1506 = vmatprep.subr.mxu0 %v1505
    %v1507 = vand.u32 %v148, 4294901760
    %1508 = vmatpush1.xpose.msra.mxu0 %v1507
    %1509 = vmatprep.subr.mxu0 0.0
    %1510 = vmatpush1.xpose.msra.mxu0 0.0
    %1511 = vmatprep.subr.mxu0 0.0
    %1512 = vmatpush1.xpose.msra.mxu0 0.0
    %1513 = vmatprep.subr.mxu0 0.0
    %1514 = vmatpush1.xpose.msra.mxu0 0.0
    %1515 = vmatprep.subr.mxu0 0.0
    %1516 = vmatpush1.xpose.msra.mxu0 0.0
    %1517 = vmatprep.subr.mxu0 0.0
    %1518 = vmatpush1.xpose.msra.mxu0 0.0
    %1519 = vmatprep.subr.mxu0 0.0
    %1520 = vmatpush1.xpose.msra.mxu0 0.0
    %1521 = vmatprep.subr.mxu0 0.0
    %1522 = vmatpush1.xpose.msra.mxu0 0.0
    %1523 = vmatprep.subr.mxu0 0.0
    %1524 = vmatpush1.xpose.msra.mxu0 0.0
    %1525 = vmatprep.subr.mxu0 0.0
    %1526 = vmatpush1.xpose.msra.mxu0 0.0
    %1527 = vmatprep.subr.mxu0 0.0
    %1528 = vmatpush1.xpose.msra.mxu0 0.0
    %1529 = vmatprep.subr.mxu0 0.0
    %1530 = vmatpush1.xpose.msra.mxu0 0.0
    %1531 = vmatprep.subr.mxu0 0.0
    %1532 = vmatpush1.xpose.msra.mxu0 0.0
    %1533 = vmatprep.subr.mxu0 0.0
    %1534 = vmatpush1.xpose.msra.mxu0 0.0
    %1535 = vmatprep.subr.mxu0 0.0
    %1536 = vmatpush1.xpose.msra.mxu0 0.0
    %1537 = vmatprep.subr.mxu0 0.0
    %1538 = vmatpush1.xpose.msra.mxu0 0.0
    %1539 = vmatprep.subr.mxu0 0.0
    %1540 = vmatpush1.xpose.msra.mxu0 0.0
    %v1541 = vand.u32 %v158, 4294901760
    %v1542 = vsub.f32 %v158, %v1541
    %v1543 = vand.u32 %v1542, 4294901760
    %v1544 = vsub.f32 %v1542, %v1543
    %v1545 = vand.u32 %v1544, 4294901760
    %1546 = vmatprep.mubr.f32.mxu0 %v1545
    %v1547 = vand.u32 %v154, 4294901760
    %v1548 = vsub.f32 %v154, %v1547
    %v1549 = vand.u32 %v1548, 4294901760
    %v1550 = vsub.f32 %v1548, %v1549
    %v1551 = vand.u32 %v1550, 4294901760
    %1552 = vmatmul.mubr.f32.gmra.mrb[0].mxu0 %v1551
    %v1553 = vpop.f32.mrb[0].mxu0
    %v1554 = vadd.f32 0.0, %v1553
    %v1555 = vpop.f32.mrb[0].mxu0
    %1556 = vdwg.mxu0
    %v1557 = vand.u32 %v119, 4294901760
    %v1558 = vsub.f32 %v119, %v1557
    %v1559 = vand.u32 %v1558, 4294901760
    %v1560 = vsub.f32 %v1558, %v1559
    %v1561 = vand.u32 %v1560, 4294901760
    %1562 = vmatprep.subr.mxu0 %v1561
    %v1563 = vand.u32 %v118, 4294901760
    %v1564 = vsub.f32 %v118, %v1563
    %v1565 = vand.u32 %v1564, 4294901760
    %v1566 = vsub.f32 %v1564, %v1565
    %v1567 = vand.u32 %v1566, 4294901760
    %1568 = vmatpush1.xpose.msra.mxu0 %v1567
    %v1569 = vand.u32 %v121, 4294901760
    %v1570 = vsub.f32 %v121, %v1569
    %v1571 = vand.u32 %v1570, 4294901760
    %v1572 = vsub.f32 %v1570, %v1571
    %v1573 = vand.u32 %v1572, 4294901760
    %1574 = vmatprep.subr.mxu0 %v1573
    %v1575 = vand.u32 %v120, 4294901760
    %v1576 = vsub.f32 %v120, %v1575
    %v1577 = vand.u32 %v1576, 4294901760
    %v1578 = vsub.f32 %v1576, %v1577
    %v1579 = vand.u32 %v1578, 4294901760
    %1580 = vmatpush1.xpose.msra.mxu0 %v1579
    %v1581 = vand.u32 %v123, 4294901760
    %v1582 = vsub.f32 %v123, %v1581
    %v1583 = vand.u32 %v1582, 4294901760
    %v1584 = vsub.f32 %v1582, %v1583
    %v1585 = vand.u32 %v1584, 4294901760
    %1586 = vmatprep.subr.mxu0 %v1585
    %v1587 = vand.u32 %v122, 4294901760
    %v1588 = vsub.f32 %v122, %v1587
    %v1589 = vand.u32 %v1588, 4294901760
    %v1590 = vsub.f32 %v1588, %v1589
    %v1591 = vand.u32 %v1590, 4294901760
    %1592 = vmatpush1.xpose.msra.mxu0 %v1591
    %v1593 = vand.u32 %v125, 4294901760
    %v1594 = vsub.f32 %v125, %v1593
    %v1595 = vand.u32 %v1594, 4294901760
    %v1596 = vsub.f32 %v1594, %v1595
    %v1597 = vand.u32 %v1596, 4294901760
    %1598 = vmatprep.subr.mxu0 %v1597
    %v1599 = vand.u32 %v124, 4294901760
    %v1600 = vsub.f32 %v124, %v1599
    %v1601 = vand.u32 %v1600, 4294901760
    %v1602 = vsub.f32 %v1600, %v1601
    %v1603 = vand.u32 %v1602, 4294901760
    %1604 = vmatpush1.xpose.msra.mxu0 %v1603
    %v1605 = vand.u32 %v127, 4294901760
    %v1606 = vsub.f32 %v127, %v1605
    %v1607 = vand.u32 %v1606, 4294901760
    %v1608 = vsub.f32 %v1606, %v1607
    %v1609 = vand.u32 %v1608, 4294901760
    %1610 = vmatprep.subr.mxu0 %v1609
    %v1611 = vand.u32 %v126, 4294901760
    %v1612 = vsub.f32 %v126, %v1611
    %v1613 = vand.u32 %v1612, 4294901760
    %v1614 = vsub.f32 %v1612, %v1613
    %v1615 = vand.u32 %v1614, 4294901760
    %1616 = vmatpush1.xpose.msra.mxu0 %v1615
    %v1617 = vand.u32 %v129, 4294901760
    %v1618 = vsub.f32 %v129, %v1617
    %v1619 = vand.u32 %v1618, 4294901760
    %v1620 = vsub.f32 %v1618, %v1619
    %v1621 = vand.u32 %v1620, 4294901760
    %1622 = vmatprep.subr.mxu0 %v1621
    %v1623 = vand.u32 %v128, 4294901760
    %v1624 = vsub.f32 %v128, %v1623
    %v1625 = vand.u32 %v1624, 4294901760
    %v1626 = vsub.f32 %v1624, %v1625
    %v1627 = vand.u32 %v1626, 4294901760
    %1628 = vmatpush1.xpose.msra.mxu0 %v1627
    %v1629 = vand.u32 %v131, 4294901760
    %v1630 = vsub.f32 %v131, %v1629
    %v1631 = vand.u32 %v1630, 4294901760
    %v1632 = vsub.f32 %v1630, %v1631
    %v1633 = vand.u32 %v1632, 4294901760
    %1634 = vmatprep.subr.mxu0 %v1633
    %v1635 = vand.u32 %v130, 4294901760
    %v1636 = vsub.f32 %v130, %v1635
    %v1637 = vand.u32 %v1636, 4294901760
    %v1638 = vsub.f32 %v1636, %v1637
    %v1639 = vand.u32 %v1638, 4294901760
    %1640 = vmatpush1.xpose.msra.mxu0 %v1639
    %v1641 = vand.u32 %v133, 4294901760
    %v1642 = vsub.f32 %v133, %v1641
    %v1643 = vand.u32 %v1642, 4294901760
    %v1644 = vsub.f32 %v1642, %v1643
    %v1645 = vand.u32 %v1644, 4294901760
    %1646 = vmatprep.subr.mxu0 %v1645
    %v1647 = vand.u32 %v132, 4294901760
    %v1648 = vsub.f32 %v132, %v1647
    %v1649 = vand.u32 %v1648, 4294901760
    %v1650 = vsub.f32 %v1648, %v1649
    %v1651 = vand.u32 %v1650, 4294901760
    %1652 = vmatpush1.xpose.msra.mxu0 %v1651
    %v1653 = vand.u32 %v135, 4294901760
    %v1654 = vsub.f32 %v135, %v1653
    %v1655 = vand.u32 %v1654, 4294901760
    %v1656 = vsub.f32 %v1654, %v1655
    %v1657 = vand.u32 %v1656, 4294901760
    %1658 = vmatprep.subr.mxu0 %v1657
    %v1659 = vand.u32 %v134, 4294901760
    %v1660 = vsub.f32 %v134, %v1659
    %v1661 = vand.u32 %v1660, 4294901760
    %v1662 = vsub.f32 %v1660, %v1661
    %v1663 = vand.u32 %v1662, 4294901760
    %1664 = vmatpush1.xpose.msra.mxu0 %v1663
    %v1665 = vand.u32 %v137, 4294901760
    %v1666 = vsub.f32 %v137, %v1665
    %v1667 = vand.u32 %v1666, 4294901760
    %v1668 = vsub.f32 %v1666, %v1667
    %v1669 = vand.u32 %v1668, 4294901760
    %1670 = vmatprep.subr.mxu0 %v1669
    %v1671 = vand.u32 %v136, 4294901760
    %v1672 = vsub.f32 %v136, %v1671
    %v1673 = vand.u32 %v1672, 4294901760
    %v1674 = vsub.f32 %v1672, %v1673
    %v1675 = vand.u32 %v1674, 4294901760
    %1676 = vmatpush1.xpose.msra.mxu0 %v1675
    %v1677 = vand.u32 %v139, 4294901760
    %v1678 = vsub.f32 %v139, %v1677
    %v1679 = vand.u32 %v1678, 4294901760
    %v1680 = vsub.f32 %v1678, %v1679
    %v1681 = vand.u32 %v1680, 4294901760
    %1682 = vmatprep.subr.mxu0 %v1681
    %v1683 = vand.u32 %v138, 4294901760
    %v1684 = vsub.f32 %v138, %v1683
    %v1685 = vand.u32 %v1684, 4294901760
    %v1686 = vsub.f32 %v1684, %v1685
    %v1687 = vand.u32 %v1686, 4294901760
    %1688 = vmatpush1.xpose.msra.mxu0 %v1687
    %v1689 = vand.u32 %v141, 4294901760
    %v1690 = vsub.f32 %v141, %v1689
    %v1691 = vand.u32 %v1690, 4294901760
    %v1692 = vsub.f32 %v1690, %v1691
    %v1693 = vand.u32 %v1692, 4294901760
    %1694 = vmatprep.subr.mxu0 %v1693
    %v1695 = vand.u32 %v140, 4294901760
    %v1696 = vsub.f32 %v140, %v1695
    %v1697 = vand.u32 %v1696, 4294901760
    %v1698 = vsub.f32 %v1696, %v1697
    %v1699 = vand.u32 %v1698, 4294901760
    %1700 = vmatpush1.xpose.msra.mxu0 %v1699
    %v1701 = vand.u32 %v143, 4294901760
    %v1702 = vsub.f32 %v143, %v1701
    %v1703 = vand.u32 %v1702, 4294901760
    %v1704 = vsub.f32 %v1702, %v1703
    %v1705 = vand.u32 %v1704, 4294901760
    %1706 = vmatprep.subr.mxu0 %v1705
    %v1707 = vand.u32 %v142, 4294901760
    %v1708 = vsub.f32 %v142, %v1707
    %v1709 = vand.u32 %v1708, 4294901760
    %v1710 = vsub.f32 %v1708, %v1709
    %v1711 = vand.u32 %v1710, 4294901760
    %1712 = vmatpush1.xpose.msra.mxu0 %v1711
    %v1713 = vand.u32 %v145, 4294901760
    %v1714 = vsub.f32 %v145, %v1713
    %v1715 = vand.u32 %v1714, 4294901760
    %v1716 = vsub.f32 %v1714, %v1715
    %v1717 = vand.u32 %v1716, 4294901760
    %1718 = vmatprep.subr.mxu0 %v1717
    %v1719 = vand.u32 %v144, 4294901760
    %v1720 = vsub.f32 %v144, %v1719
    %v1721 = vand.u32 %v1720, 4294901760
    %v1722 = vsub.f32 %v1720, %v1721
    %v1723 = vand.u32 %v1722, 4294901760
    %1724 = vmatpush1.xpose.msra.mxu0 %v1723
    %v1725 = vand.u32 %v147, 4294901760
    %v1726 = vsub.f32 %v147, %v1725
    %v1727 = vand.u32 %v1726, 4294901760
    %v1728 = vsub.f32 %v1726, %v1727
    %v1729 = vand.u32 %v1728, 4294901760
    %1730 = vmatprep.subr.mxu0 %v1729
    %v1731 = vand.u32 %v146, 4294901760
    %v1732 = vsub.f32 %v146, %v1731
    %v1733 = vand.u32 %v1732, 4294901760
    %v1734 = vsub.f32 %v1732, %v1733
    %v1735 = vand.u32 %v1734, 4294901760
    %1736 = vmatpush1.xpose.msra.mxu0 %v1735
    %v1737 = vand.u32 %v149, 4294901760
    %v1738 = vsub.f32 %v149, %v1737
    %v1739 = vand.u32 %v1738, 4294901760
    %v1740 = vsub.f32 %v1738, %v1739
    %v1741 = vand.u32 %v1740, 4294901760
    %1742 = vmatprep.subr.mxu0 %v1741
    %v1743 = vand.u32 %v148, 4294901760
    %v1744 = vsub.f32 %v148, %v1743
    %v1745 = vand.u32 %v1744, 4294901760
    %v1746 = vsub.f32 %v1744, %v1745
    %v1747 = vand.u32 %v1746, 4294901760
    %1748 = vmatpush1.xpose.msra.mxu0 %v1747
    %1749 = vmatprep.subr.mxu0 0.0
    %1750 = vmatpush1.xpose.msra.mxu0 0.0
    %1751 = vmatprep.subr.mxu0 0.0
    %1752 = vmatpush1.xpose.msra.mxu0 0.0
    %1753 = vmatprep.subr.mxu0 0.0
    %1754 = vmatpush1.xpose.msra.mxu0 0.0
    %1755 = vmatprep.subr.mxu0 0.0
    %1756 = vmatpush1.xpose.msra.mxu0 0.0
    %1757 = vmatprep.subr.mxu0 0.0
    %1758 = vmatpush1.xpose.msra.mxu0 0.0
    %1759 = vmatprep.subr.mxu0 0.0
    %1760 = vmatpush1.xpose.msra.mxu0 0.0
    %1761 = vmatprep.subr.mxu0 0.0
    %1762 = vmatpush1.xpose.msra.mxu0 0.0
    %1763 = vmatprep.subr.mxu0 0.0
    %1764 = vmatpush1.xpose.msra.mxu0 0.0
    %1765 = vmatprep.subr.mxu0 0.0
    %1766 = vmatpush1.xpose.msra.mxu0 0.0
    %1767 = vmatprep.subr.mxu0 0.0
    %1768 = vmatpush1.xpose.msra.mxu0 0.0
    %1769 = vmatprep.subr.mxu0 0.0
    %1770 = vmatpush1.xpose.msra.mxu0 0.0
    %1771 = vmatprep.subr.mxu0 0.0
    %1772 = vmatpush1.xpose.msra.mxu0 0.0
    %1773 = vmatprep.subr.mxu0 0.0
    %1774 = vmatpush1.xpose.msra.mxu0 0.0
    %1775 = vmatprep.subr.mxu0 0.0
    %1776 = vmatpush1.xpose.msra.mxu0 0.0
    %1777 = vmatprep.subr.mxu0 0.0
    %1778 = vmatpush1.xpose.msra.mxu0 0.0
    %1779 = vmatprep.subr.mxu0 0.0
    %1780 = vmatpush1.xpose.msra.mxu0 0.0
    %v1781 = vand.u32 %v158, 4294901760
    %1782 = vmatprep.mubr.f32.mxu0 %v1781
    %v1783 = vand.u32 %v154, 4294901760
    %1784 = vmatmul.mubr.f32.gmra.mrb[0].mxu0 %v1783
    %v1785 = vpop.f32.mrb[0].mxu0
    %v1786 = vadd.f32 %v1554, %v1785
    %v1787 = vpop.f32.mrb[0].mxu0
    %1788 = vdwg.mxu0
    %v1789 = vand.u32 %v119, 4294901760
    %v1790 = vsub.f32 %v119, %v1789
    %1791 = vmatprep.subr.mxu0 %v1790
    %v1792 = vand.u32 %v118, 4294901760
    %v1793 = vsub.f32 %v118, %v1792
    %1794 = vmatpush1.xpose.msra.mxu0 %v1793
    %v1795 = vand.u32 %v121, 4294901760
    %v1796 = vsub.f32 %v121, %v1795
    %1797 = vmatprep.subr.mxu0 %v1796
    %v1798 = vand.u32 %v120, 4294901760
    %v1799 = vsub.f32 %v120, %v1798
    %1800 = vmatpush1.xpose.msra.mxu0 %v1799
    %v1801 = vand.u32 %v123, 4294901760
    %v1802 = vsub.f32 %v123, %v1801
    %1803 = vmatprep.subr.mxu0 %v1802
    %v1804 = vand.u32 %v122, 4294901760
    %v1805 = vsub.f32 %v122, %v1804
    %1806 = vmatpush1.xpose.msra.mxu0 %v1805
    %v1807 = vand.u32 %v125, 4294901760
    %v1808 = vsub.f32 %v125, %v1807
    %1809 = vmatprep.subr.mxu0 %v1808
    %v1810 = vand.u32 %v124, 4294901760
    %v1811 = vsub.f32 %v124, %v1810
    %1812 = vmatpush1.xpose.msra.mxu0 %v1811
    %v1813 = vand.u32 %v127, 4294901760
    %v1814 = vsub.f32 %v127, %v1813
    %1815 = vmatprep.subr.mxu0 %v1814
    %v1816 = vand.u32 %v126, 4294901760
    %v1817 = vsub.f32 %v126, %v1816
    %1818 = vmatpush1.xpose.msra.mxu0 %v1817
    %v1819 = vand.u32 %v129, 4294901760
    %v1820 = vsub.f32 %v129, %v1819
    %1821 = vmatprep.subr.mxu0 %v1820
    %v1822 = vand.u32 %v128, 4294901760
    %v1823 = vsub.f32 %v128, %v1822
    %1824 = vmatpush1.xpose.msra.mxu0 %v1823
    %v1825 = vand.u32 %v131, 4294901760
    %v1826 = vsub.f32 %v131, %v1825
    %1827 = vmatprep.subr.mxu0 %v1826
    %v1828 = vand.u32 %v130, 4294901760
    %v1829 = vsub.f32 %v130, %v1828
    %1830 = vmatpush1.xpose.msra.mxu0 %v1829
    %v1831 = vand.u32 %v133, 4294901760
    %v1832 = vsub.f32 %v133, %v1831
    %1833 = vmatprep.subr.mxu0 %v1832
    %v1834 = vand.u32 %v132, 4294901760
    %v1835 = vsub.f32 %v132, %v1834
    %1836 = vmatpush1.xpose.msra.mxu0 %v1835
    %v1837 = vand.u32 %v135, 4294901760
    %v1838 = vsub.f32 %v135, %v1837
    %1839 = vmatprep.subr.mxu0 %v1838
    %v1840 = vand.u32 %v134, 4294901760
    %v1841 = vsub.f32 %v134, %v1840
    %1842 = vmatpush1.xpose.msra.mxu0 %v1841
    %v1843 = vand.u32 %v137, 4294901760
    %v1844 = vsub.f32 %v137, %v1843
    %1845 = vmatprep.subr.mxu0 %v1844
    %v1846 = vand.u32 %v136, 4294901760
    %v1847 = vsub.f32 %v136, %v1846
    %1848 = vmatpush1.xpose.msra.mxu0 %v1847
    %v1849 = vand.u32 %v139, 4294901760
    %v1850 = vsub.f32 %v139, %v1849
    %1851 = vmatprep.subr.mxu0 %v1850
    %v1852 = vand.u32 %v138, 4294901760
    %v1853 = vsub.f32 %v138, %v1852
    %1854 = vmatpush1.xpose.msra.mxu0 %v1853
    %v1855 = vand.u32 %v141, 4294901760
    %v1856 = vsub.f32 %v141, %v1855
    %1857 = vmatprep.subr.mxu0 %v1856
    %v1858 = vand.u32 %v140, 4294901760
    %v1859 = vsub.f32 %v140, %v1858
    %1860 = vmatpush1.xpose.msra.mxu0 %v1859
    %v1861 = vand.u32 %v143, 4294901760
    %v1862 = vsub.f32 %v143, %v1861
    %1863 = vmatprep.subr.mxu0 %v1862
    %v1864 = vand.u32 %v142, 4294901760
    %v1865 = vsub.f32 %v142, %v1864
    %1866 = vmatpush1.xpose.msra.mxu0 %v1865
    %v1867 = vand.u32 %v145, 4294901760
    %v1868 = vsub.f32 %v145, %v1867
    %1869 = vmatprep.subr.mxu0 %v1868
    %v1870 = vand.u32 %v144, 4294901760
    %v1871 = vsub.f32 %v144, %v1870
    %1872 = vmatpush1.xpose.msra.mxu0 %v1871
    %v1873 = vand.u32 %v147, 4294901760
    %v1874 = vsub.f32 %v147, %v1873
    %1875 = vmatprep.subr.mxu0 %v1874
    %v1876 = vand.u32 %v146, 4294901760
    %v1877 = vsub.f32 %v146, %v1876
    %1878 = vmatpush1.xpose.msra.mxu0 %v1877
    %v1879 = vand.u32 %v149, 4294901760
    %v1880 = vsub.f32 %v149, %v1879
    %1881 = vmatprep.subr.mxu0 %v1880
    %v1882 = vand.u32 %v148, 4294901760
    %v1883 = vsub.f32 %v148, %v1882
    %1884 = vmatpush1.xpose.msra.mxu0 %v1883
    %1885 = vmatprep.subr.mxu0 0.0
    %1886 = vmatpush1.xpose.msra.mxu0 0.0
    %1887 = vmatprep.subr.mxu0 0.0
    %1888 = vmatpush1.xpose.msra.mxu0 0.0
    %1889 = vmatprep.subr.mxu0 0.0
    %1890 = vmatpush1.xpose.msra.mxu0 0.0
    %1891 = vmatprep.subr.mxu0 0.0
    %1892 = vmatpush1.xpose.msra.mxu0 0.0
    %1893 = vmatprep.subr.mxu0 0.0
    %1894 = vmatpush1.xpose.msra.mxu0 0.0
    %1895 = vmatprep.subr.mxu0 0.0
    %1896 = vmatpush1.xpose.msra.mxu0 0.0
    %1897 = vmatprep.subr.mxu0 0.0
    %1898 = vmatpush1.xpose.msra.mxu0 0.0
    %1899 = vmatprep.subr.mxu0 0.0
    %1900 = vmatpush1.xpose.msra.mxu0 0.0
    %1901 = vmatprep.subr.mxu0 0.0
    %1902 = vmatpush1.xpose.msra.mxu0 0.0
    %1903 = vmatprep.subr.mxu0 0.0
    %1904 = vmatpush1.xpose.msra.mxu0 0.0
    %1905 = vmatprep.subr.mxu0 0.0
    %1906 = vmatpush1.xpose.msra.mxu0 0.0
    %1907 = vmatprep.subr.mxu0 0.0
    %1908 = vmatpush1.xpose.msra.mxu0 0.0
    %1909 = vmatprep.subr.mxu0 0.0
    %1910 = vmatpush1.xpose.msra.mxu0 0.0
    %1911 = vmatprep.subr.mxu0 0.0
    %1912 = vmatpush1.xpose.msra.mxu0 0.0
    %1913 = vmatprep.subr.mxu0 0.0
    %1914 = vmatpush1.xpose.msra.mxu0 0.0
    %1915 = vmatprep.subr.mxu0 0.0
    %1916 = vmatpush1.xpose.msra.mxu0 0.0
    %v1917 = vand.u32 %v158, 4294901760
    %v1918 = vsub.f32 %v158, %v1917
    %1919 = vmatprep.mubr.f32.mxu0 %v1918
    %v1920 = vand.u32 %v154, 4294901760
    %v1921 = vsub.f32 %v154, %v1920
    %1922 = vmatmul.mubr.f32.gmra.mrb[0].mxu0 %v1921
    %v1923 = vpop.f32.mrb[0].mxu0
    %v1924 = vadd.f32 %v1786, %v1923
    %v1925 = vpop.f32.mrb[0].mxu0
    %1926 = vdwg.mxu0
    %v1927 = vand.u32 %v119, 4294901760
    %1928 = vmatprep.subr.mxu0 %v1927
    %v1929 = vand.u32 %v118, 4294901760
    %1930 = vmatpush1.xpose.msra.mxu0 %v1929
    %v1931 = vand.u32 %v121, 4294901760
    %1932 = vmatprep.subr.mxu0 %v1931
    %v1933 = vand.u32 %v120, 4294901760
    %1934 = vmatpush1.xpose.msra.mxu0 %v1933
    %v1935 = vand.u32 %v123, 4294901760
    %1936 = vmatprep.subr.mxu0 %v1935
    %v1937 = vand.u32 %v122, 4294901760
    %1938 = vmatpush1.xpose.msra.mxu0 %v1937
    %v1939 = vand.u32 %v125, 4294901760
    %1940 = vmatprep.subr.mxu0 %v1939
    %v1941 = vand.u32 %v124, 4294901760
    %1942 = vmatpush1.xpose.msra.mxu0 %v1941
    %v1943 = vand.u32 %v127, 4294901760
    %1944 = vmatprep.subr.mxu0 %v1943
    %v1945 = vand.u32 %v126, 4294901760
    %1946 = vmatpush1.xpose.msra.mxu0 %v1945
    %v1947 = vand.u32 %v129, 4294901760
    %1948 = vmatprep.subr.mxu0 %v1947
    %v1949 = vand.u32 %v128, 4294901760
    %1950 = vmatpush1.xpose.msra.mxu0 %v1949
    %v1951 = vand.u32 %v131, 4294901760
    %1952 = vmatprep.subr.mxu0 %v1951
    %v1953 = vand.u32 %v130, 4294901760
    %1954 = vmatpush1.xpose.msra.mxu0 %v1953
    %v1955 = vand.u32 %v133, 4294901760
    %1956 = vmatprep.subr.mxu0 %v1955
    %v1957 = vand.u32 %v132, 4294901760
    %1958 = vmatpush1.xpose.msra.mxu0 %v1957
    %v1959 = vand.u32 %v135, 4294901760
    %1960 = vmatprep.subr.mxu0 %v1959
    %v1961 = vand.u32 %v134, 4294901760
    %1962 = vmatpush1.xpose.msra.mxu0 %v1961
    %v1963 = vand.u32 %v137, 4294901760
    %1964 = vmatprep.subr.mxu0 %v1963
    %v1965 = vand.u32 %v136, 4294901760
    %1966 = vmatpush1.xpose.msra.mxu0 %v1965
    %v1967 = vand.u32 %v139, 4294901760
    %1968 = vmatprep.subr.mxu0 %v1967
    %v1969 = vand.u32 %v138, 4294901760
    %1970 = vmatpush1.xpose.msra.mxu0 %v1969
    %v1971 = vand.u32 %v141, 4294901760
    %1972 = vmatprep.subr.mxu0 %v1971
    %v1973 = vand.u32 %v140, 4294901760
    %1974 = vmatpush1.xpose.msra.mxu0 %v1973
    %v1975 = vand.u32 %v143, 4294901760
    %1976 = vmatprep.subr.mxu0 %v1975
    %v1977 = vand.u32 %v142, 4294901760
    %1978 = vmatpush1.xpose.msra.mxu0 %v1977
    %v1979 = vand.u32 %v145, 4294901760
    %1980 = vmatprep.subr.mxu0 %v1979
    %v1981 = vand.u32 %v144, 4294901760
    %1982 = vmatpush1.xpose.msra.mxu0 %v1981
    %v1983 = vand.u32 %v147, 4294901760
    %1984 = vmatprep.subr.mxu0 %v1983
    %v1985 = vand.u32 %v146, 4294901760
    %1986 = vmatpush1.xpose.msra.mxu0 %v1985
    %v1987 = vand.u32 %v149, 4294901760
    %1988 = vmatprep.subr.mxu0 %v1987
    %v1989 = vand.u32 %v148, 4294901760
    %1990 = vmatpush1.xpose.msra.mxu0 %v1989
    %1991 = vmatprep.subr.mxu0 0.0
    %1992 = vmatpush1.xpose.msra.mxu0 0.0
    %1993 = vmatprep.subr.mxu0 0.0
    %1994 = vmatpush1.xpose.msra.mxu0 0.0
    %1995 = vmatprep.subr.mxu0 0.0
    %1996 = vmatpush1.xpose.msra.mxu0 0.0
    %1997 = vmatprep.subr.mxu0 0.0
    %1998 = vmatpush1.xpose.msra.mxu0 0.0
    %1999 = vmatprep.subr.mxu0 0.0
    %2000 = vmatpush1.xpose.msra.mxu0 0.0
    %2001 = vmatprep.subr.mxu0 0.0
    %2002 = vmatpush1.xpose.msra.mxu0 0.0
    %2003 = vmatprep.subr.mxu0 0.0
    %2004 = vmatpush1.xpose.msra.mxu0 0.0
    %2005 = vmatprep.subr.mxu0 0.0
    %2006 = vmatpush1.xpose.msra.mxu0 0.0
    %2007 = vmatprep.subr.mxu0 0.0
    %2008 = vmatpush1.xpose.msra.mxu0 0.0
    %2009 = vmatprep.subr.mxu0 0.0
    %2010 = vmatpush1.xpose.msra.mxu0 0.0
    %2011 = vmatprep.subr.mxu0 0.0
    %2012 = vmatpush1.xpose.msra.mxu0 0.0
    %2013 = vmatprep.subr.mxu0 0.0
    %2014 = vmatpush1.xpose.msra.mxu0 0.0
    %2015 = vmatprep.subr.mxu0 0.0
    %2016 = vmatpush1.xpose.msra.mxu0 0.0
    %2017 = vmatprep.subr.mxu0 0.0
    %2018 = vmatpush1.xpose.msra.mxu0 0.0
    %2019 = vmatprep.subr.mxu0 0.0
    %2020 = vmatpush1.xpose.msra.mxu0 0.0
    %2021 = vmatprep.subr.mxu0 0.0
    %2022 = vmatpush1.xpose.msra.mxu0 0.0
    %v2023 = vand.u32 %v158, 4294901760
    %v2024 = vsub.f32 %v158, %v2023
    %v2025 = vand.u32 %v2024, 4294901760
    %2026 = vmatprep.mubr.f32.mxu0 %v2025
    %v2027 = vand.u32 %v154, 4294901760
    %v2028 = vsub.f32 %v154, %v2027
    %v2029 = vand.u32 %v2028, 4294901760
    %2030 = vmatmul.mubr.f32.gmra.mrb[0].mxu0 %v2029
    %v2031 = vpop.f32.mrb[0].mxu0
    %v2032 = vadd.f32 %v1924, %v2031
    %v2033 = vpop.f32.mrb[0].mxu0
    %2034 = vdwg.mxu0
    %v2035 = vand.u32 %v119, 4294901760
    %v2036 = vsub.f32 %v119, %v2035
    %v2037 = vand.u32 %v2036, 4294901760
    %2038 = vmatprep.subr.mxu0 %v2037
    %v2039 = vand.u32 %v118, 4294901760
    %v2040 = vsub.f32 %v118, %v2039
    %v2041 = vand.u32 %v2040, 4294901760
    %2042 = vmatpush1.xpose.msra.mxu0 %v2041
    %v2043 = vand.u32 %v121, 4294901760
    %v2044 = vsub.f32 %v121, %v2043
    %v2045 = vand.u32 %v2044, 4294901760
    %2046 = vmatprep.subr.mxu0 %v2045
    %v2047 = vand.u32 %v120, 4294901760
    %v2048 = vsub.f32 %v120, %v2047
    %v2049 = vand.u32 %v2048, 4294901760
    %2050 = vmatpush1.xpose.msra.mxu0 %v2049
    %v2051 = vand.u32 %v123, 4294901760
    %v2052 = vsub.f32 %v123, %v2051
    %v2053 = vand.u32 %v2052, 4294901760
    %2054 = vmatprep.subr.mxu0 %v2053
    %v2055 = vand.u32 %v122, 4294901760
    %v2056 = vsub.f32 %v122, %v2055
    %v2057 = vand.u32 %v2056, 4294901760
    %2058 = vmatpush1.xpose.msra.mxu0 %v2057
    %v2059 = vand.u32 %v125, 4294901760
    %v2060 = vsub.f32 %v125, %v2059
    %v2061 = vand.u32 %v2060, 4294901760
    %2062 = vmatprep.subr.mxu0 %v2061
    %v2063 = vand.u32 %v124, 4294901760
    %v2064 = vsub.f32 %v124, %v2063
    %v2065 = vand.u32 %v2064, 4294901760
    %2066 = vmatpush1.xpose.msra.mxu0 %v2065
    %v2067 = vand.u32 %v127, 4294901760
    %v2068 = vsub.f32 %v127, %v2067
    %v2069 = vand.u32 %v2068, 4294901760
    %2070 = vmatprep.subr.mxu0 %v2069
    %v2071 = vand.u32 %v126, 4294901760
    %v2072 = vsub.f32 %v126, %v2071
    %v2073 = vand.u32 %v2072, 4294901760
    %2074 = vmatpush1.xpose.msra.mxu0 %v2073
    %v2075 = vand.u32 %v129, 4294901760
    %v2076 = vsub.f32 %v129, %v2075
    %v2077 = vand.u32 %v2076, 4294901760
    %2078 = vmatprep.subr.mxu0 %v2077
    %v2079 = vand.u32 %v128, 4294901760
    %v2080 = vsub.f32 %v128, %v2079
    %v2081 = vand.u32 %v2080, 4294901760
    %2082 = vmatpush1.xpose.msra.mxu0 %v2081
    %v2083 = vand.u32 %v131, 4294901760
    %v2084 = vsub.f32 %v131, %v2083
    %v2085 = vand.u32 %v2084, 4294901760
    %2086 = vmatprep.subr.mxu0 %v2085
    %v2087 = vand.u32 %v130, 4294901760
    %v2088 = vsub.f32 %v130, %v2087
    %v2089 = vand.u32 %v2088, 4294901760
    %2090 = vmatpush1.xpose.msra.mxu0 %v2089
    %v2091 = vand.u32 %v133, 4294901760
    %v2092 = vsub.f32 %v133, %v2091
    %v2093 = vand.u32 %v2092, 4294901760
    %2094 = vmatprep.subr.mxu0 %v2093
    %v2095 = vand.u32 %v132, 4294901760
    %v2096 = vsub.f32 %v132, %v2095
    %v2097 = vand.u32 %v2096, 4294901760
    %2098 = vmatpush1.xpose.msra.mxu0 %v2097
    %v2099 = vand.u32 %v135, 4294901760
    %v2100 = vsub.f32 %v135, %v2099
    %v2101 = vand.u32 %v2100, 4294901760
    %2102 = vmatprep.subr.mxu0 %v2101
    %v2103 = vand.u32 %v134, 4294901760
    %v2104 = vsub.f32 %v134, %v2103
    %v2105 = vand.u32 %v2104, 4294901760
    %2106 = vmatpush1.xpose.msra.mxu0 %v2105
    %v2107 = vand.u32 %v137, 4294901760
    %v2108 = vsub.f32 %v137, %v2107
    %v2109 = vand.u32 %v2108, 4294901760
    %2110 = vmatprep.subr.mxu0 %v2109
    %v2111 = vand.u32 %v136, 4294901760
    %v2112 = vsub.f32 %v136, %v2111
    %v2113 = vand.u32 %v2112, 4294901760
    %2114 = vmatpush1.xpose.msra.mxu0 %v2113
    %v2115 = vand.u32 %v139, 4294901760
    %v2116 = vsub.f32 %v139, %v2115
    %v2117 = vand.u32 %v2116, 4294901760
    %2118 = vmatprep.subr.mxu0 %v2117
    %v2119 = vand.u32 %v138, 4294901760
    %v2120 = vsub.f32 %v138, %v2119
    %v2121 = vand.u32 %v2120, 4294901760
    %2122 = vmatpush1.xpose.msra.mxu0 %v2121
    %v2123 = vand.u32 %v141, 4294901760
    %v2124 = vsub.f32 %v141, %v2123
    %v2125 = vand.u32 %v2124, 4294901760
    %2126 = vmatprep.subr.mxu0 %v2125
    %v2127 = vand.u32 %v140, 4294901760
    %v2128 = vsub.f32 %v140, %v2127
    %v2129 = vand.u32 %v2128, 4294901760
    %2130 = vmatpush1.xpose.msra.mxu0 %v2129
    %v2131 = vand.u32 %v143, 4294901760
    %v2132 = vsub.f32 %v143, %v2131
    %v2133 = vand.u32 %v2132, 4294901760
    %2134 = vmatprep.subr.mxu0 %v2133
    %v2135 = vand.u32 %v142, 4294901760
    %v2136 = vsub.f32 %v142, %v2135
    %v2137 = vand.u32 %v2136, 4294901760
    %2138 = vmatpush1.xpose.msra.mxu0 %v2137
    %v2139 = vand.u32 %v145, 4294901760
    %v2140 = vsub.f32 %v145, %v2139
    %v2141 = vand.u32 %v2140, 4294901760
    %2142 = vmatprep.subr.mxu0 %v2141
    %v2143 = vand.u32 %v144, 4294901760
    %v2144 = vsub.f32 %v144, %v2143
    %v2145 = vand.u32 %v2144, 4294901760
    %2146 = vmatpush1.xpose.msra.mxu0 %v2145
    %v2147 = vand.u32 %v147, 4294901760
    %v2148 = vsub.f32 %v147, %v2147
    %v2149 = vand.u32 %v2148, 4294901760
    %2150 = vmatprep.subr.mxu0 %v2149
    %v2151 = vand.u32 %v146, 4294901760
    %v2152 = vsub.f32 %v146, %v2151
    %v2153 = vand.u32 %v2152, 4294901760
    %2154 = vmatpush1.xpose.msra.mxu0 %v2153
    %v2155 = vand.u32 %v149, 4294901760
    %v2156 = vsub.f32 %v149, %v2155
    %v2157 = vand.u32 %v2156, 4294901760
    %2158 = vmatprep.subr.mxu0 %v2157
    %v2159 = vand.u32 %v148, 4294901760
    %v2160 = vsub.f32 %v148, %v2159
    %v2161 = vand.u32 %v2160, 4294901760
    %2162 = vmatpush1.xpose.msra.mxu0 %v2161
    %2163 = vmatprep.subr.mxu0 0.0
    %2164 = vmatpush1.xpose.msra.mxu0 0.0
    %2165 = vmatprep.subr.mxu0 0.0
    %2166 = vmatpush1.xpose.msra.mxu0 0.0
    %2167 = vmatprep.subr.mxu0 0.0
    %2168 = vmatpush1.xpose.msra.mxu0 0.0
    %2169 = vmatprep.subr.mxu0 0.0
    %2170 = vmatpush1.xpose.msra.mxu0 0.0
    %2171 = vmatprep.subr.mxu0 0.0
    %2172 = vmatpush1.xpose.msra.mxu0 0.0
    %2173 = vmatprep.subr.mxu0 0.0
    %2174 = vmatpush1.xpose.msra.mxu0 0.0
    %2175 = vmatprep.subr.mxu0 0.0
    %2176 = vmatpush1.xpose.msra.mxu0 0.0
    %2177 = vmatprep.subr.mxu0 0.0
    %2178 = vmatpush1.xpose.msra.mxu0 0.0
    %2179 = vmatprep.subr.mxu0 0.0
    %2180 = vmatpush1.xpose.msra.mxu0 0.0
    %2181 = vmatprep.subr.mxu0 0.0
    %2182 = vmatpush1.xpose.msra.mxu0 0.0
    %2183 = vmatprep.subr.mxu0 0.0
    %2184 = vmatpush1.xpose.msra.mxu0 0.0
    %2185 = vmatprep.subr.mxu0 0.0
    %2186 = vmatpush1.xpose.msra.mxu0 0.0
    %2187 = vmatprep.subr.mxu0 0.0
    %2188 = vmatpush1.xpose.msra.mxu0 0.0
    %2189 = vmatprep.subr.mxu0 0.0
    %2190 = vmatpush1.xpose.msra.mxu0 0.0
    %2191 = vmatprep.subr.mxu0 0.0
    %2192 = vmatpush1.xpose.msra.mxu0 0.0
    %2193 = vmatprep.subr.mxu0 0.0
    %2194 = vmatpush1.xpose.msra.mxu0 0.0
    %v2195 = vand.u32 %v158, 4294901760
    %2196 = vmatprep.mubr.f32.mxu0 %v2195
    %v2197 = vand.u32 %v154, 4294901760
    %2198 = vmatmul.mubr.f32.gmra.mrb[0].mxu0 %v2197
    %v2199 = vpop.f32.mrb[0].mxu0
    %v2200 = vadd.f32 %v2032, %v2199
    %v2201 = vpop.f32.mrb[0].mxu0
    %2202 = vdwg.mxu0
    %v2203 = vand.u32 %v119, 4294901760
    %2204 = vmatprep.subr.mxu0 %v2203
    %v2205 = vand.u32 %v118, 4294901760
    %2206 = vmatpush1.xpose.msra.mxu0 %v2205
    %v2207 = vand.u32 %v121, 4294901760
    %2208 = vmatprep.subr.mxu0 %v2207
    %v2209 = vand.u32 %v120, 4294901760
    %2210 = vmatpush1.xpose.msra.mxu0 %v2209
    %v2211 = vand.u32 %v123, 4294901760
    %2212 = vmatprep.subr.mxu0 %v2211
    %v2213 = vand.u32 %v122, 4294901760
    %2214 = vmatpush1.xpose.msra.mxu0 %v2213
    %v2215 = vand.u32 %v125, 4294901760
    %2216 = vmatprep.subr.mxu0 %v2215
    %v2217 = vand.u32 %v124, 4294901760
    %2218 = vmatpush1.xpose.msra.mxu0 %v2217
    %v2219 = vand.u32 %v127, 4294901760
    %2220 = vmatprep.subr.mxu0 %v2219
    %v2221 = vand.u32 %v126, 4294901760
    %2222 = vmatpush1.xpose.msra.mxu0 %v2221
    %v2223 = vand.u32 %v129, 4294901760
    %2224 = vmatprep.subr.mxu0 %v2223
    %v2225 = vand.u32 %v128, 4294901760
    %2226 = vmatpush1.xpose.msra.mxu0 %v2225
    %v2227 = vand.u32 %v131, 4294901760
    %2228 = vmatprep.subr.mxu0 %v2227
    %v2229 = vand.u32 %v130, 4294901760
    %2230 = vmatpush1.xpose.msra.mxu0 %v2229
    %v2231 = vand.u32 %v133, 4294901760
    %2232 = vmatprep.subr.mxu0 %v2231
    %v2233 = vand.u32 %v132, 4294901760
    %2234 = vmatpush1.xpose.msra.mxu0 %v2233
    %v2235 = vand.u32 %v135, 4294901760
    %2236 = vmatprep.subr.mxu0 %v2235
    %v2237 = vand.u32 %v134, 4294901760
    %2238 = vmatpush1.xpose.msra.mxu0 %v2237
    %v2239 = vand.u32 %v137, 4294901760
    %2240 = vmatprep.subr.mxu0 %v2239
    %v2241 = vand.u32 %v136, 4294901760
    %2242 = vmatpush1.xpose.msra.mxu0 %v2241
    %v2243 = vand.u32 %v139, 4294901760
    %2244 = vmatprep.subr.mxu0 %v2243
    %v2245 = vand.u32 %v138, 4294901760
    %2246 = vmatpush1.xpose.msra.mxu0 %v2245
    %v2247 = vand.u32 %v141, 4294901760
    %2248 = vmatprep.subr.mxu0 %v2247
    %v2249 = vand.u32 %v140, 4294901760
    %2250 = vmatpush1.xpose.msra.mxu0 %v2249
    %v2251 = vand.u32 %v143, 4294901760
    %2252 = vmatprep.subr.mxu0 %v2251
    %v2253 = vand.u32 %v142, 4294901760
    %2254 = vmatpush1.xpose.msra.mxu0 %v2253
    %v2255 = vand.u32 %v145, 4294901760
    %2256 = vmatprep.subr.mxu0 %v2255
    %v2257 = vand.u32 %v144, 4294901760
    %2258 = vmatpush1.xpose.msra.mxu0 %v2257
    %v2259 = vand.u32 %v147, 4294901760
    %2260 = vmatprep.subr.mxu0 %v2259
    %v2261 = vand.u32 %v146, 4294901760
    %2262 = vmatpush1.xpose.msra.mxu0 %v2261
    %v2263 = vand.u32 %v149, 4294901760
    %2264 = vmatprep.subr.mxu0 %v2263
    %v2265 = vand.u32 %v148, 4294901760
    %2266 = vmatpush1.xpose.msra.mxu0 %v2265
    %2267 = vmatprep.subr.mxu0 0.0
    %2268 = vmatpush1.xpose.msra.mxu0 0.0
    %2269 = vmatprep.subr.mxu0 0.0
    %2270 = vmatpush1.xpose.msra.mxu0 0.0
    %2271 = vmatprep.subr.mxu0 0.0
    %2272 = vmatpush1.xpose.msra.mxu0 0.0
    %2273 = vmatprep.subr.mxu0 0.0
    %2274 = vmatpush1.xpose.msra.mxu0 0.0
    %2275 = vmatprep.subr.mxu0 0.0
    %2276 = vmatpush1.xpose.msra.mxu0 0.0
    %2277 = vmatprep.subr.mxu0 0.0
    %2278 = vmatpush1.xpose.msra.mxu0 0.0
    %2279 = vmatprep.subr.mxu0 0.0
    %2280 = vmatpush1.xpose.msra.mxu0 0.0
    %2281 = vmatprep.subr.mxu0 0.0
    %2282 = vmatpush1.xpose.msra.mxu0 0.0
    %2283 = vmatprep.subr.mxu0 0.0
    %2284 = vmatpush1.xpose.msra.mxu0 0.0
    %2285 = vmatprep.subr.mxu0 0.0
    %2286 = vmatpush1.xpose.msra.mxu0 0.0
    %2287 = vmatprep.subr.mxu0 0.0
    %2288 = vmatpush1.xpose.msra.mxu0 0.0
    %2289 = vmatprep.subr.mxu0 0.0
    %2290 = vmatpush1.xpose.msra.mxu0 0.0
    %2291 = vmatprep.subr.mxu0 0.0
    %2292 = vmatpush1.xpose.msra.mxu0 0.0
    %2293 = vmatprep.subr.mxu0 0.0
    %2294 = vmatpush1.xpose.msra.mxu0 0.0
    %2295 = vmatprep.subr.mxu0 0.0
    %2296 = vmatpush1.xpose.msra.mxu0 0.0
    %2297 = vmatprep.subr.mxu0 0.0
    %2298 = vmatpush1.xpose.msra.mxu0 0.0
    %v2299 = vand.u32 %v158, 4294901760
    %2300 = vmatprep.mubr.f32.mxu0 %v2299
    %v2301 = vand.u32 %v154, 4294901760
    %2302 = vmatmul.mubr.f32.gmra.mrb[0].mxu0 %v2301
    %v2303 = vpop.f32.mrb[0].mxu0
    %v2304 = vadd.f32 %v2200, %v2303
    %v2305 = vpop.f32.mrb[0].mxu0
    %2306 = vdwg.mxu0
    %v2310 = vcombine.low %v1441, %v1443
    %v2312 = vunpack.c.l.s4 1966171168
    %v2313 = vunpack.c.0.s8 %v2312
    %v2314 = vlaneseq
    %v2315 = vshrl.u32 %v2314, 7
    %v2316 = vsub.s32 %v2313, %v2315
    %v2317 = vrot.slane %v2310, %v2316
    %v2319 = vunpack.c.l.s4 1966171168
    %v2320 = vunpack.c.0.s8 %v2319
    %v2321 = vlaneseq
    %v2322 = vshrl.u32 %v2321, 7
    %v2323 = vsub.s32 %v2320, %v2322
    %v2324 = vrot.slane %v2304, %v2323
    %v2325 = vcombine.low %v2317, %v2324
    %v2327 = vunpack.c.l.s4 1966171168
    %v2328 = vunpack.c.0.s8 %v2327
    %v2329 = vlaneseq
    %v2330 = vshrl.u32 %v2329, 7
    %v2331 = vsub.s32 %v2328, %v2330
    %v2332 = vrot.slane %v2325, %v2331
    %v2334 = vadd.f32 %v52, %v2332
    %v2335 = vlaneseq
    %vm2336 = vcmp.ge.s32.totalorder %v2335, 0
    %vm2337 = vcmp.lt.s32.totalorder %v2335, 384
    %vm2338 = vmand %vm2336, %vm2337
    %2339 = vst.msk [vmem:[#allocation2] sm:$0x7] %vm2338, %v2334
    // Predicated region
    $region30: #{tpu_custom_call.1} parent=1 // pred_check
      %p2340 = pneg %p43
    $region31: #{tpu_custom_call.1} parent=1 // pred_check_branch
      %2342 = sbr.rel (%p2340) target = $region33
    $region32: #{tpu_custom_call.1} parent=1 // pred_region
      %s2343 = sld [smem:[#allocation3]]
      %s2344 = sld [smem:[#allocation3 + $0x1]]
      %s2345 = sld [smem:[#allocation3 + $0x2]]
      %v2346 = vld [vmem:[#allocation2] sm:$0x7]
      %v2347 = vstv %s2345
      %v2348 = vadd.f32 %v2346, %v2347
      %v2349 = vstv %s2343
      %v2350 = vmul.f32 %v2349, %v2348
      %v2351 = vld [vmem:[%s3] sm:$0x7]
      %v2352 = vstv %s2344
      %v2353 = vmul.f32 %v2352, %v2351
      %v2354 = vadd.f32 %v2350, %v2353
      %2355 = vst.msk [vmem:[#allocation8] sm:$0x7] %vm2338, %v2354
    $region33: #{tpu_custom_call.1} parent=1 // pred_fallthru
      _
    // Predicated region
    $region34: #{tpu_custom_call.1} parent=1 // pred_check
      _
    $region35: #{tpu_custom_call.1} parent=1 // pred_check_branch
      %2357 = sbr.rel (0) target = $region37
    $region36: #{tpu_custom_call.1} parent=1 // pred_region
      %s2359 = ssub.s32 48, 48
      %2360 = vsyncadd [#allocation5], %s2359
      %s2362 = sshll.u32 [#allocation8], 4
      %s2363 = int_to_ptr.vmem [resolvable:$true] %s2362
      %2365 = dma.vmem_to_hbm [thread:$0]  %s2363, 48, %s4, [#allocation5]
    $region37: #{tpu_custom_call.1} parent=1 // pred_fallthru
      _
    // Predicated region
    $region38: #{tpu_custom_call.1} parent=1 // pred_check
      _
    $region39: #{tpu_custom_call.1} parent=1 // pred_check_branch
      %2367 = sbr.rel (0) target = $region41
    $region40: #{tpu_custom_call.1} parent=1 // pred_region
      %2368 = dma.done [#allocation5], 48
    $region41: #{tpu_custom_call.1} parent=1 // pred_fallthru
      _
    %2369 = vsyncpa [#allocation4], 1
    %2370 = vsyncpa [#allocation5], 1
    %2371 = vsyncpa [#allocation6], 1

</llo_original>
